<compile_context>
chip_gen: v5e
topology: v5e:2x2
jax: 0.10.0
libtpu: 0.0.40
codegen_flags: <defaults>
</compile_context>

<pallas_src>
import math
import functools

import jax
import jax.numpy as jnp
from jax import lax
from jax.experimental import pallas as pl
from jax.experimental.pallas import tpu as pltpu

MIN_NORM = 1e-15
EPS_F32 = 4e-3          # PoincareBall.eps[torch.float32]
LANE = 128
SUBLANE = 8


def _round_up(v, m):
    return ((v + m - 1) // m) * m


# ---------- manifold math (wrapper / reference helpers, pure JAX) ----------

def _artanh(x):
    # Matches the reference clamp (1 - 1e-15). Inputs are pre-projected onto the ball
    # (||x|| <= (1 - eps)/sqrt(c)), so the argument never reaches 1.
    x = jnp.clip(x, -1.0 + 1e-15, 1.0 - 1e-15)
    return 0.5 * (jnp.log1p(x) - jnp.log1p(-x))


def _norm_last(x):
    return jnp.maximum(jnp.sqrt(jnp.sum(x * x, axis=-1, keepdims=True)), MIN_NORM)


def _proj(x, c):
    norm = _norm_last(x)
    maxnorm = (1.0 - EPS_F32) / math.sqrt(c)
    projected = x / norm * maxnorm
    return jnp.where(norm > maxnorm, projected, x)


def _expmap0(u, c):
    sqrt_c = math.sqrt(c)
    u_norm = _norm_last(u)
    return jnp.tanh(sqrt_c * u_norm) * u / (sqrt_c * u_norm)


def _logmap0(p, c):
    sqrt_c = math.sqrt(c)
    p_norm = _norm_last(p)
    return (_artanh(sqrt_c * p_norm) / (sqrt_c * p_norm)) * p


def _mobius_add(x, y, c):
    x2 = jnp.sum(x * x, axis=-1, keepdims=True)
    y2 = jnp.sum(y * y, axis=-1, keepdims=True)
    xy = jnp.sum(x * y, axis=-1, keepdims=True)
    num = (1.0 + 2.0 * c * xy + c * y2) * x + (1.0 - c * x2) * y
    denom = 1.0 + 2.0 * c * xy + c * c * x2 * y2
    return num / jnp.maximum(denom, MIN_NORM)


# ---------- Pallas kernel ----------

def _hnn_kernel(x_ref, w_ref, hb_ref, hbsq_ref, o_ref, *, c):
    x = x_ref[...]            # (tm, in_p)   f32 (padded lanes are zero)
    w = w_ref[...]            # (out_p, in_p) f32 or bf16, natural torch layout
    hb = hb_ref[...]          # (1, out_p)   = proj(expmap0(proj_tan0(bias)))  (hoisted)
    y2 = hbsq_ref[...]        # (1, 1)       = sum(hyp_bias**2)                (hoisted)

    sqrt_c = math.sqrt(c)
    maxnorm = (1.0 - EPS_F32) / sqrt_c

    # ---- HypLinear: mobius_matvec + proj folded into one per-row scale on mx ----
    x_norm = jnp.maximum(jnp.sqrt(jnp.sum(x * x, axis=-1, keepdims=True)), MIN_NORM)
    xd = x if w.dtype == jnp.float32 else x.astype(w.dtype)
    mx = lax.dot_general(xd, w, (((1,), (1,)), ((), ())),
                         preferred_element_type=jnp.float32)            # (tm, out_p) = x @ W.T
    mx_ss = jnp.sum(mx * mx, axis=-1, keepdims=True)                    # reused for all-zero test
    mx_norm = jnp.maximum(jnp.sqrt(mx_ss), MIN_NORM)
    t = jnp.tanh((mx_norm / x_norm) * _artanh(sqrt_c * x_norm))         # >= 0
    # res = proj(mobius_matvec(W, x)) = s_row * mx, with ||res|| = res_norm (analytic)
    res_norm = jnp.where(mx_ss == 0.0, 0.0,
                         jnp.minimum(jnp.maximum(t / sqrt_c, MIN_NORM), maxnorm))
    s_row = res_norm / mx_norm                                          # (tm, 1)

    # ---- proj(mobius_add(res, hyp_bias)) via two per-row coefficients ----
    x2 = res_norm * res_norm
    xy = s_row * jnp.sum(mx * hb, axis=-1, keepdims=True)               # <res, hb>
    coef = 1.0 + 2.0 * c * xy
    inv_d = 1.0 / jnp.maximum(coef + (c * c) * x2 * y2, MIN_NORM)       # per-row reciprocal
    alpha = (coef + c * y2) * s_row * inv_d                             # multiplies mx
    beta = (1.0 - c * x2) * inv_d                                       # multiplies hb
    add = alpha * mx + beta * hb                                        # (tm, out_p)

    add_norm = jnp.maximum(jnp.sqrt(jnp.sum(add * add, axis=-1, keepdims=True)), MIN_NORM)
    pscale = jnp.where(add_norm > maxnorm, maxnorm / add_norm, 1.0)     # proj scale
    p_norm = jnp.minimum(add_norm, maxnorm)                             # ||proj(add)||, analytic

    # ---- HypAct: proj(expmap0(relu(logmap0(p)))) folded onto relu(add) ----
    # logmap0 scale g >= 0 and pscale >= 0 commute with relu, so relu(logmap0(p)) = g*pscale*relu(add)
    g = _artanh(sqrt_c * p_norm) / (sqrt_c * p_norm)                    # (tm, 1)
    radd = jnp.maximum(add, 0.0)                                        # relu(add)
    r = jnp.sqrt(jnp.sum(radd * radd, axis=-1, keepdims=True))
    u_norm = jnp.maximum(g * pscale * r, MIN_NORM)                      # ||relu(logmap0(p))||
    su = sqrt_c * u_norm
    th = jnp.tanh(su)
    y_norm = jnp.maximum(th / sqrt_c, MIN_NORM)                         # analytic ||expmap0(.)||
    f_row = (th / su) * (g * pscale) * jnp.where(y_norm > maxnorm, maxnorm / y_norm, 1.0)
    o_ref[...] = radd * f_row                                           # single full-width scale


# ---------- tiling / VMEM heuristics ----------

def _choose_tile_m(n, in_p, out_p, w_bytes, vmem_budget_bytes):
    bpe = 4
    # Per-row resident bytes: double-buffered x tile + double-buffered out tile,
    # ~6 live (tm, out_p) f32 intermediates, ~4 live (tm, 1) per-row scalars
    # (each (tm,1) f32 still occupies a full 128-lane vreg row).
    per_row = bpe * (2 * in_p + 2 * out_p + 6 * out_p + 4 * LANE)
    # Weight (single-buffered), bias vectors, misc slack.
    fixed = w_bytes + bpe * 4 * out_p + (2 << 20)
    avail = max(vmem_budget_bytes - fixed, per_row * SUBLANE)
    tm = int(avail // per_row)
    tm = min(tm, 4096)                          # diminishing returns past a few K rows
    tm = min(tm, _round_up(n, SUBLANE))         # never larger than the (padded) problem
    if n > SUBLANE:
        # keep >= 2 grid steps so the "parallel" axis can feed both v7x TensorCores
        tm = min(tm, _round_up((n + 1) // 2, SUBLANE))
    return max(SUBLANE, (tm // SUBLANE) * SUBLANE)


# ---------- wrapper ----------

def hnn_layer(x, weight, bias, *, c, tile_m=None, vmem_budget_bytes=None,
              matmul_in_bf16=None):
    """x: (N, in_f); weight: (out_f, in_f) (torch layout); bias: (out_f,)."""
    x = jnp.asarray(x, jnp.float32)
    weight = jnp.asarray(weight, jnp.float32)
    bias = jnp.asarray(bias, jnp.float32)
    n, in_f = x.shape
    out_f, in_f_w = weight.shape
    assert in_f_w == in_f
    c = float(c)

    # Loop-invariant bias path hoisted out of the kernel (proj_tan0 == identity).
    hyp_bias = _proj(_expmap0(bias.reshape(1, out_f), c), c)              # (1, out_f)
    hb_sq = jnp.sum(hyp_bias * hyp_bias, axis=-1, keepdims=True)          # (1, 1)

    # Lane-dense feature padding: zero-padded columns stay exactly zero through
    # mobius_matvec / mobius_add / expmap0 and do not perturb any norm.
    in_p = _round_up(in_f, LANE)
    out_p = _round_up(out_f, LANE)

    if matmul_in_bf16 is None:
        matmul_in_bf16 = (in_p * out_p) >= (512 * 512)   # only worth it for wide layers

    w_p = weight
    if (in_p != in_f) or (out_p != out_f):
        w_p = jnp.pad(weight, ((0, out_p - out_f), (0, in_p - in_f)))
    if matmul_in_bf16:
        w_p = w_p.astype(jnp.bfloat16)                   # halves weight HBM + VMEM traffic
    hb_p = hyp_bias if out_p == out_f else jnp.pad(hyp_bias, ((0, 0), (0, out_p - out_f)))

    # Per-generation VMEM budget (v5e/v6e: 128 MiB physical, v7x: 64 MiB).
    if vmem_budget_bytes is None:
        try:
            cap = int(pltpu.get_tpu_info().vmem_capacity_bytes)
        except Exception:
            cap = 64 * 1024 * 1024                       # v7x-safe fallback
        vmem_budget_bytes = (cap * 3) // 4
    else:
        cap = vmem_budget_bytes + (16 << 20)
    vmem_limit = int(min(cap - (8 << 20), vmem_budget_bytes + (8 << 20)))
    vmem_limit = max(vmem_limit, 32 << 20)

    w_bytes = int(w_p.size) * jnp.dtype(w_p.dtype).itemsize
    if tile_m is None:
        tile_m = _choose_tile_m(n, in_p, out_p, w_bytes, vmem_budget_bytes)
    tile_m = max(SUBLANE, (int(tile_m) // SUBLANE) * SUBLANE)

    n_pad = int(pl.cdiv(n, tile_m)) * tile_m
    pad_rows, pad_cols = n_pad - n, in_p - in_f
    if pad_rows or pad_cols:
        # Single combined pad pass (rows + lanes); zero rows flow through safely.
        x = jnp.pad(x, ((0, pad_rows), (0, pad_cols)))

    kernel = functools.partial(_hnn_kernel, c=c)

    def _make_call(single_buffer_consts):
        const_mode = {"pipeline_mode": pl.Buffered(1)} if single_buffer_consts else {}
        return pl.pallas_call(
            kernel,
            out_shape=jax.ShapeDtypeStruct((n_pad, out_p), jnp.float32),
            grid_spec=pltpu.PrefetchScalarGridSpec(
                num_scalar_prefetch=0,
                grid=(n_pad // tile_m,),
                in_specs=[
                    pl.BlockSpec((tile_m, in_p), lambda i: (i, 0)),
                    pl.BlockSpec((out_p, in_p), lambda i: (0, 0), **const_mode),
                    pl.BlockSpec((1, out_p), lambda i: (0, 0), **const_mode),
                    pl.BlockSpec((1, 1), lambda i: (0, 0), **const_mode),
                ],
                out_specs=pl.BlockSpec((tile_m, out_p), lambda i: (i, 0)),
            ),
            compiler_params=pltpu.CompilerParams(
                dimension_semantics=("parallel",),
                vmem_limit_bytes=vmem_limit),
        )

    try:
        out = _make_call(True)(x, w_p, hb_p, hb_sq)
    except Exception:
        # Fallback: plain (double-buffered) specs if Buffered(1) is rejected by this jax build.
        out = _make_call(False)(x, w_p, hb_p, hb_sq)
    return out[:n, :out_f]


# ---------- pure-JAX reference (faithful to the torch module, eval mode) ----------

def hnn_layer_ref(x, weight, bias, c):
    sqrt_c = math.sqrt(c)
    x_norm = _norm_last(x)
    mx = x @ weight.T
    mx_norm = _norm_last(mx)
    res_c = jnp.tanh(mx_norm / x_norm * _artanh(sqrt_c * x_norm)) * mx / (mx_norm * sqrt_c)
    mv = jnp.where(jnp.all(mx == 0.0, axis=-1, keepdims=True), 0.0, res_c)
    res = _proj(mv, c)
    hyp_bias = _proj(_expmap0(bias.reshape(1, -1), c), c)
    res = _proj(_mobius_add(res, hyp_bias, c), c)
    xt = jax.nn.relu(_logmap0(res, c))
    return _proj(_expmap0(xt, c), c)


if __name__ == "__main__":
    key = jax.random.PRNGKey(0)
    k_x, k_w, k_b = jax.random.split(key, 3)

    # Non-multiples of 8 / 128 so the row padding and the lane-dense feature padding
    # (plus the multi-step "parallel" grid) are all exercised.
    N, IN_F, OUT_F = 20, 32, 48
    C = 1.0

    # Input: points on the Poincare ball (expmap0 of small tangent vectors).
    u = 0.3 * jax.random.normal(k_x, (N, IN_F), dtype=jnp.float32)
    x = _proj(_expmap0(u, C), C)

    # HypLinear params: xavier_uniform_(gain=sqrt(2)) weight (deterministic jax PRNG).
    gain = math.sqrt(2.0)
    bound = gain * math.sqrt(6.0 / (IN_F + OUT_F))
    weight = jax.random.uniform(k_w, (OUT_F, IN_F), minval=-bound, maxval=bound,
                                dtype=jnp.float32)

    # (a) module-default params: zero bias (init.constant_(bias, 0))
    bias0 = jnp.zeros((OUT_F,), dtype=jnp.float32)
    out0 = jax.block_until_ready(hnn_layer(x, weight, bias0, c=C))
    ref0 = hnn_layer_ref(x, weight, bias0, C)
    assert out0.shape == (N, OUT_F)
    assert bool(jnp.all(jnp.isfinite(out0)))
    assert bool(jnp.allclose(out0, ref0, atol=1e-4, rtol=1e-4))

    # (b) non-zero bias exercises the hoisted bias / mobius_add path
    bias1 = 0.1 * jax.random.normal(k_b, (OUT_F,), dtype=jnp.float32)
    out1 = jax.block_until_ready(hnn_layer(x, weight, bias1, c=C))
    ref1 = hnn_layer_ref(x, weight, bias1, C)
    assert bool(jnp.all(jnp.isfinite(out1)))
    assert bool(jnp.allclose(out1, ref1, atol=1e-4, rtol=1e-4))

    print("KERNEL_OK")
</pallas_src>

<mosaic_0001>
module attributes {stable_mosaic.version = 11 : i64} {
  func.func @_hnn_kernel(%arg0: i32, %arg1: memref<16x128xf32, #tpu.memory_space<vmem>>, %arg2: memref<128x128xf32, #tpu.memory_space<vmem>>, %arg3: memref<1x128xf32, #tpu.memory_space<vmem>>, %arg4: memref<1x1xf32, #tpu.memory_space<vmem>>, %arg5: memref<16x128xf32, #tpu.memory_space<vmem>>) attributes {dimension_semantics = [#tpu.dimension_semantics<parallel>], iteration_bounds = array<i64: 2>, scalar_prefetch = 0 : i64, scratch_operands = 0 : i64, tpu.core_type = #tpu.core_type<tc>, window_params = [{transform_indices = @transform_0, window_bounds = array<i64: 16, 128>}, {pipeline_mode = #tpu.pipeline_mode<synchronous>, transform_indices = @transform_1, window_bounds = array<i64: 128, 128>}, {pipeline_mode = #tpu.pipeline_mode<synchronous>, transform_indices = @transform_2, window_bounds = array<i64: 1, 128>}, {pipeline_mode = #tpu.pipeline_mode<synchronous>, transform_indices = @transform_3, window_bounds = array<i64: 1, 1>}, {transform_indices = @transform_4, window_bounds = array<i64: 16, 128>}]} {
    %c0 = arith.constant 0 : index
    %c0_0 = arith.constant 0 : index
    %0 = vector.load %arg1[%c0, %c0_0] : memref<16x128xf32, #tpu.memory_space<vmem>>, vector<16x128xf32>
    %c0_1 = arith.constant 0 : index
    %c0_2 = arith.constant 0 : index
    %1 = vector.load %arg2[%c0_1, %c0_2] : memref<128x128xf32, #tpu.memory_space<vmem>>, vector<128x128xf32>
    %c0_3 = arith.constant 0 : index
    %c0_4 = arith.constant 0 : index
    %2 = vector.load %arg3[%c0_3, %c0_4] : memref<1x128xf32, #tpu.memory_space<vmem>>, vector<1x128xf32>
    %c0_5 = arith.constant 0 : index
    %c0_6 = arith.constant 0 : index
    %3 = vector.load %arg4[%c0_5, %c0_6] : memref<1x1xf32, #tpu.memory_space<vmem>>, vector<1x1xf32>
    %4 = arith.mulf %0, %0 : vector<16x128xf32>
    %cst = arith.constant dense<0.000000e+00> : vector<16xf32>
    %5 = vector.multi_reduction <add>, %4, %cst [1] : vector<16x128xf32> to vector<16xf32>
    %6 = vector.shape_cast %5 : vector<16xf32> to vector<16x1xf32>
    %7 = math.sqrt %6 : vector<16x1xf32>
    %cst_7 = arith.constant 1.000000e-15 : f32
    %8 = vector.broadcast %cst_7 : f32 to vector<16x1xf32>
    %9 = arith.maximumf %7, %8 : vector<16x1xf32>
    %cst_8 = arith.constant dense<0.000000e+00> : vector<16x128xf32>
    %10 = tpu.matmul %0, %1, %cst_8 {dimension_numbers = #tpu.dot_dimension_numbers<[1], [1], [0], [0], [0, 0, 1, 0], [], []>} : vector<16x128xf32>, vector<128x128xf32>, vector<16x128xf32> -> vector<16x128xf32>
    %11 = arith.mulf %10, %10 : vector<16x128xf32>
    %cst_9 = arith.constant dense<0.000000e+00> : vector<16xf32>
    %12 = vector.multi_reduction <add>, %11, %cst_9 [1] : vector<16x128xf32> to vector<16xf32>
    %13 = vector.shape_cast %12 : vector<16xf32> to vector<16x1xf32>
    %14 = math.sqrt %13 : vector<16x1xf32>
    %cst_10 = arith.constant 1.000000e-15 : f32
    %15 = vector.broadcast %cst_10 : f32 to vector<16x1xf32>
    %16 = arith.maximumf %14, %15 : vector<16x1xf32>
    %17 = arith.divf %16, %9 : vector<16x1xf32>
    %cst_11 = arith.constant 1.000000e+00 : f32
    %18 = vector.broadcast %cst_11 : f32 to vector<16x1xf32>
    %19 = arith.mulf %18, %9 : vector<16x1xf32>
    %cst_12 = arith.constant -1.000000e+00 : f32
    %cst_13 = arith.constant 1.000000e+00 : f32
    %20 = vector.broadcast %cst_12 : f32 to vector<16x1xf32>
    %21 = arith.maximumf %20, %19 : vector<16x1xf32>
    %22 = vector.broadcast %cst_13 : f32 to vector<16x1xf32>
    %23 = arith.minimumf %22, %21 : vector<16x1xf32>
    %24 = math.log1p %23 : vector<16x1xf32>
    %cst_14 = arith.constant 0.000000e+00 : f32
    %25 = vector.broadcast %cst_14 : f32 to vector<16x1xf32>
    %26 = arith.subf %25, %23 : vector<16x1xf32>
    %27 = math.log1p %26 : vector<16x1xf32>
    %28 = arith.subf %24, %27 : vector<16x1xf32>
    %cst_15 = arith.constant 5.000000e-01 : f32
    %29 = vector.broadcast %cst_15 : f32 to vector<16x1xf32>
    %30 = arith.mulf %29, %28 : vector<16x1xf32>
    %31 = arith.mulf %17, %30 : vector<16x1xf32>
    %32 = math.tanh %31 : vector<16x1xf32>
    %cst_16 = arith.constant 0.000000e+00 : f32
    %33 = vector.broadcast %cst_16 : f32 to vector<16x1xf32>
    %34 = arith.cmpf oeq, %13, %33 : vector<16x1xf32>
    %cst_17 = arith.constant 1.000000e+00 : f32
    %35 = vector.broadcast %cst_17 : f32 to vector<16x1xf32>
    %36 = arith.divf %32, %35 : vector<16x1xf32>
    %cst_18 = arith.constant 1.000000e-15 : f32
    %37 = vector.broadcast %cst_18 : f32 to vector<16x1xf32>
    %38 = arith.maximumf %36, %37 : vector<16x1xf32>
    %cst_19 = arith.constant 0.995999991 : f32
    %39 = vector.broadcast %cst_19 : f32 to vector<16x1xf32>
    %40 = arith.minimumf %38, %39 : vector<16x1xf32>
    %cst_20 = arith.constant 0.000000e+00 : f32
    %41 = vector.broadcast %cst_20 : f32 to vector<16x1xf32>
    %42 = arith.select %34, %41, %40 : vector<16x1xi1>, vector<16x1xf32>
    %43 = arith.divf %42, %16 : vector<16x1xf32>
    %44 = arith.mulf %42, %42 : vector<16x1xf32>
    %45 = vector.broadcast %2 : vector<1x128xf32> to vector<16x128xf32>
    %46 = arith.mulf %10, %45 : vector<16x128xf32>
    %cst_21 = arith.constant dense<0.000000e+00> : vector<16xf32>
    %47 = vector.multi_reduction <add>, %46, %cst_21 [1] : vector<16x128xf32> to vector<16xf32>
    %48 = vector.shape_cast %47 : vector<16xf32> to vector<16x1xf32>
    %49 = arith.mulf %43, %48 : vector<16x1xf32>
    %cst_22 = arith.constant 2.000000e+00 : f32
    %50 = vector.broadcast %cst_22 : f32 to vector<16x1xf32>
    %51 = arith.mulf %50, %49 : vector<16x1xf32>
    %cst_23 = arith.constant 1.000000e+00 : f32
    %52 = vector.broadcast %cst_23 : f32 to vector<16x1xf32>
    %53 = arith.addf %52, %51 : vector<16x1xf32>
    %cst_24 = arith.constant 1.000000e+00 : f32
    %54 = vector.broadcast %cst_24 : f32 to vector<16x1xf32>
    %55 = arith.mulf %54, %44 : vector<16x1xf32>
    %56 = vector.broadcast %3 : vector<1x1xf32> to vector<16x1xf32>
    %57 = arith.mulf %55, %56 : vector<16x1xf32>
    %58 = arith.addf %53, %57 : vector<16x1xf32>
    %cst_25 = arith.constant 1.000000e-15 : f32
    %59 = vector.broadcast %cst_25 : f32 to vector<16x1xf32>
    %60 = arith.maximumf %58, %59 : vector<16x1xf32>
    %cst_26 = arith.constant 1.000000e+00 : f32
    %61 = vector.broadcast %cst_26 : f32 to vector<16x1xf32>
    %62 = arith.divf %61, %60 : vector<16x1xf32>
    %cst_27 = arith.constant 1.000000e+00 : f32
    %63 = vector.broadcast %cst_27 : f32 to vector<1x1xf32>
    %64 = arith.mulf %63, %3 : vector<1x1xf32>
    %65 = vector.broadcast %64 : vector<1x1xf32> to vector<16x1xf32>
    %66 = arith.addf %53, %65 : vector<16x1xf32>
    %67 = arith.mulf %66, %43 : vector<16x1xf32>
    %68 = arith.mulf %67, %62 : vector<16x1xf32>
    %cst_28 = arith.constant 1.000000e+00 : f32
    %69 = vector.broadcast %cst_28 : f32 to vector<16x1xf32>
    %70 = arith.mulf %69, %44 : vector<16x1xf32>
    %cst_29 = arith.constant 1.000000e+00 : f32
    %71 = vector.broadcast %cst_29 : f32 to vector<16x1xf32>
    %72 = arith.subf %71, %70 : vector<16x1xf32>
    %73 = arith.mulf %72, %62 : vector<16x1xf32>
    %74 = vector.broadcast %68 : vector<16x1xf32> to vector<16x128xf32>
    %75 = arith.mulf %74, %10 : vector<16x128xf32>
    %76 = vector.broadcast %73 : vector<16x1xf32> to vector<16x128xf32>
    %77 = vector.broadcast %2 : vector<1x128xf32> to vector<16x128xf32>
    %78 = arith.mulf %76, %77 : vector<16x128xf32>
    %79 = arith.addf %75, %78 : vector<16x128xf32>
    %80 = arith.mulf %79, %79 : vector<16x128xf32>
    %cst_30 = arith.constant dense<0.000000e+00> : vector<16xf32>
    %81 = vector.multi_reduction <add>, %80, %cst_30 [1] : vector<16x128xf32> to vector<16xf32>
    %82 = vector.shape_cast %81 : vector<16xf32> to vector<16x1xf32>
    %83 = math.sqrt %82 : vector<16x1xf32>
    %cst_31 = arith.constant 1.000000e-15 : f32
    %84 = vector.broadcast %cst_31 : f32 to vector<16x1xf32>
    %85 = arith.maximumf %83, %84 : vector<16x1xf32>
    %cst_32 = arith.constant 0.995999991 : f32
    %86 = vector.broadcast %cst_32 : f32 to vector<16x1xf32>
    %87 = arith.cmpf ogt, %85, %86 : vector<16x1xf32>
    %cst_33 = arith.constant 0.995999991 : f32
    %88 = vector.broadcast %cst_33 : f32 to vector<16x1xf32>
    %89 = arith.divf %88, %85 : vector<16x1xf32>
    %cst_34 = arith.constant 1.000000e+00 : f32
    %90 = vector.broadcast %cst_34 : f32 to vector<16x1xf32>
    %91 = arith.select %87, %89, %90 : vector<16x1xi1>, vector<16x1xf32>
    %cst_35 = arith.constant 0.995999991 : f32
    %92 = vector.broadcast %cst_35 : f32 to vector<16x1xf32>
    %93 = arith.minimumf %85, %92 : vector<16x1xf32>
    %cst_36 = arith.constant 1.000000e+00 : f32
    %94 = vector.broadcast %cst_36 : f32 to vector<16x1xf32>
    %95 = arith.mulf %94, %93 : vector<16x1xf32>
    %cst_37 = arith.constant -1.000000e+00 : f32
    %cst_38 = arith.constant 1.000000e+00 : f32
    %96 = vector.broadcast %cst_37 : f32 to vector<16x1xf32>
    %97 = arith.maximumf %96, %95 : vector<16x1xf32>
    %98 = vector.broadcast %cst_38 : f32 to vector<16x1xf32>
    %99 = arith.minimumf %98, %97 : vector<16x1xf32>
    %100 = math.log1p %99 : vector<16x1xf32>
    %cst_39 = arith.constant 0.000000e+00 : f32
    %101 = vector.broadcast %cst_39 : f32 to vector<16x1xf32>
    %102 = arith.subf %101, %99 : vector<16x1xf32>
    %103 = math.log1p %102 : vector<16x1xf32>
    %104 = arith.subf %100, %103 : vector<16x1xf32>
    %cst_40 = arith.constant 5.000000e-01 : f32
    %105 = vector.broadcast %cst_40 : f32 to vector<16x1xf32>
    %106 = arith.mulf %105, %104 : vector<16x1xf32>
    %cst_41 = arith.constant 1.000000e+00 : f32
    %107 = vector.broadcast %cst_41 : f32 to vector<16x1xf32>
    %108 = arith.mulf %107, %93 : vector<16x1xf32>
    %109 = arith.divf %106, %108 : vector<16x1xf32>
    %cst_42 = arith.constant 0.000000e+00 : f32
    %110 = vector.broadcast %cst_42 : f32 to vector<16x128xf32>
    %111 = arith.maximumf %79, %110 : vector<16x128xf32>
    %112 = arith.mulf %111, %111 : vector<16x128xf32>
    %cst_43 = arith.constant dense<0.000000e+00> : vector<16xf32>
    %113 = vector.multi_reduction <add>, %112, %cst_43 [1] : vector<16x128xf32> to vector<16xf32>
    %114 = vector.shape_cast %113 : vector<16xf32> to vector<16x1xf32>
    %115 = math.sqrt %114 : vector<16x1xf32>
    %116 = arith.mulf %109, %91 : vector<16x1xf32>
    %117 = arith.mulf %116, %115 : vector<16x1xf32>
    %cst_44 = arith.constant 1.000000e-15 : f32
    %118 = vector.broadcast %cst_44 : f32 to vector<16x1xf32>
    %119 = arith.maximumf %117, %118 : vector<16x1xf32>
    %cst_45 = arith.constant 1.000000e+00 : f32
    %120 = vector.broadcast %cst_45 : f32 to vector<16x1xf32>
    %121 = arith.mulf %120, %119 : vector<16x1xf32>
    %122 = math.tanh %121 : vector<16x1xf32>
    %cst_46 = arith.constant 1.000000e+00 : f32
    %123 = vector.broadcast %cst_46 : f32 to vector<16x1xf32>
    %124 = arith.divf %122, %123 : vector<16x1xf32>
    %cst_47 = arith.constant 1.000000e-15 : f32
    %125 = vector.broadcast %cst_47 : f32 to vector<16x1xf32>
    %126 = arith.maximumf %124, %125 : vector<16x1xf32>
    %127 = arith.divf %122, %121 : vector<16x1xf32>
    %128 = arith.mulf %109, %91 : vector<16x1xf32>
    %129 = arith.mulf %127, %128 : vector<16x1xf32>
    %cst_48 = arith.constant 0.995999991 : f32
    %130 = vector.broadcast %cst_48 : f32 to vector<16x1xf32>
    %131 = arith.cmpf ogt, %126, %130 : vector<16x1xf32>
    %cst_49 = arith.constant 0.995999991 : f32
    %132 = vector.broadcast %cst_49 : f32 to vector<16x1xf32>
    %133 = arith.divf %132, %126 : vector<16x1xf32>
    %cst_50 = arith.constant 1.000000e+00 : f32
    %134 = vector.broadcast %cst_50 : f32 to vector<16x1xf32>
    %135 = arith.select %131, %133, %134 : vector<16x1xi1>, vector<16x1xf32>
    %136 = arith.mulf %129, %135 : vector<16x1xf32>
    %137 = vector.broadcast %136 : vector<16x1xf32> to vector<16x128xf32>
    %138 = arith.mulf %111, %137 : vector<16x128xf32>
    %c0_51 = arith.constant 0 : index
    %c0_52 = arith.constant 0 : index
    %139 = vector.load %arg5[%c0_51, %c0_52] : memref<16x128xf32, #tpu.memory_space<vmem>>, vector<16x128xf32>
    tpu.vector_store %arg5[%c0_51, %c0_52], %138 {strides = array<i32>} : memref<16x128xf32, #tpu.memory_space<vmem>>, vector<16x128xf32>,
    return
  }
  func.func @transform_0(%arg0: i32) -> (i32, i32) {
    %c0_i32 = arith.constant 0 : i32
    %c0_i32_0 = arith.constant 0 : i32
    return %arg0, %c0_i32 : i32, i32
  }
  func.func @transform_1(%arg0: i32) -> (i32, i32) {
    %c0_i32 = arith.constant 0 : i32
    %c0_i32_0 = arith.constant 0 : i32
    %c0_i32_1 = arith.constant 0 : i32
    return %c0_i32, %c0_i32_0 : i32, i32
  }
  func.func @transform_2(%arg0: i32) -> (i32, i32) {
    %c0_i32 = arith.constant 0 : i32
    %c0_i32_0 = arith.constant 0 : i32
    %c0_i32_1 = arith.constant 0 : i32
    return %c0_i32, %c0_i32_0 : i32, i32
  }
  func.func @transform_3(%arg0: i32) -> (i32, i32) {
    %c0_i32 = arith.constant 0 : i32
    %c0_i32_0 = arith.constant 0 : i32
    %c0_i32_1 = arith.constant 0 : i32
    return %c0_i32, %c0_i32_0 : i32, i32
  }
  func.func @transform_4(%arg0: i32) -> (i32, i32) {
    %c0_i32 = arith.constant 0 : i32
    %c0_i32_0 = arith.constant 0 : i32
    return %arg0, %c0_i32 : i32, i32
  }
}

module attributes {stable_mosaic.version = 11 : i64} {
  func.func @_hnn_kernel(%arg0: i32, %arg1: memref<16x128xf32, #tpu.memory_space<vmem>>, %arg2: memref<128x128xf32, #tpu.memory_space<vmem>>, %arg3: memref<1x128xf32, #tpu.memory_space<vmem>>, %arg4: memref<1x1xf32, #tpu.memory_space<vmem>>, %arg5: memref<16x128xf32, #tpu.memory_space<vmem>>) attributes {dimension_semantics = [#tpu.dimension_semantics<parallel>], iteration_bounds = array<i64: 2>, scalar_prefetch = 0 : i64, scratch_operands = 0 : i64, tpu.core_type = #tpu.core_type<tc>, window_params = [{transform_indices = @transform_0, window_bounds = array<i64: 16, 128>}, {pipeline_mode = #tpu.pipeline_mode<synchronous>, transform_indices = @transform_1, window_bounds = array<i64: 128, 128>}, {pipeline_mode = #tpu.pipeline_mode<synchronous>, transform_indices = @transform_2, window_bounds = array<i64: 1, 128>}, {pipeline_mode = #tpu.pipeline_mode<synchronous>, transform_indices = @transform_3, window_bounds = array<i64: 1, 1>}, {transform_indices = @transform_4, window_bounds = array<i64: 16, 128>}]} {
    %c0 = arith.constant 0 : index
    %c0_0 = arith.constant 0 : index
    %0 = vector.load %arg1[%c0, %c0_0] : memref<16x128xf32, #tpu.memory_space<vmem>>, vector<16x128xf32>
    %c0_1 = arith.constant 0 : index
    %c0_2 = arith.constant 0 : index
    %1 = vector.load %arg2[%c0_1, %c0_2] : memref<128x128xf32, #tpu.memory_space<vmem>>, vector<128x128xf32>
    %c0_3 = arith.constant 0 : index
    %c0_4 = arith.constant 0 : index
    %2 = vector.load %arg3[%c0_3, %c0_4] : memref<1x128xf32, #tpu.memory_space<vmem>>, vector<1x128xf32>
    %c0_5 = arith.constant 0 : index
    %c0_6 = arith.constant 0 : index
    %3 = vector.load %arg4[%c0_5, %c0_6] : memref<1x1xf32, #tpu.memory_space<vmem>>, vector<1x1xf32>
    %4 = arith.mulf %0, %0 : vector<16x128xf32>
    %cst = arith.constant dense<0.000000e+00> : vector<16xf32>
    %5 = vector.multi_reduction <add>, %4, %cst [1] : vector<16x128xf32> to vector<16xf32>
    %6 = vector.shape_cast %5 : vector<16xf32> to vector<16x1xf32>
    %7 = math.sqrt %6 : vector<16x1xf32>
    %cst_7 = arith.constant 1.000000e-15 : f32
    %8 = vector.broadcast %cst_7 : f32 to vector<16x1xf32>
    %9 = arith.maximumf %7, %8 : vector<16x1xf32>
    %cst_8 = arith.constant dense<0.000000e+00> : vector<16x128xf32>
    %10 = tpu.matmul %0, %1, %cst_8 {dimension_numbers = #tpu.dot_dimension_numbers<[1], [1], [0], [0], [0, 0, 1, 0], [], []>} : vector<16x128xf32>, vector<128x128xf32>, vector<16x128xf32> -> vector<16x128xf32>
    %11 = arith.mulf %10, %10 : vector<16x128xf32>
    %cst_9 = arith.constant dense<0.000000e+00> : vector<16xf32>
    %12 = vector.multi_reduction <add>, %11, %cst_9 [1] : vector<16x128xf32> to vector<16xf32>
    %13 = vector.shape_cast %12 : vector<16xf32> to vector<16x1xf32>
    %14 = math.sqrt %13 : vector<16x1xf32>
    %cst_10 = arith.constant 1.000000e-15 : f32
    %15 = vector.broadcast %cst_10 : f32 to vector<16x1xf32>
    %16 = arith.maximumf %14, %15 : vector<16x1xf32>
    %17 = arith.divf %16, %9 : vector<16x1xf32>
    %cst_11 = arith.constant 1.000000e+00 : f32
    %18 = vector.broadcast %cst_11 : f32 to vector<16x1xf32>
    %19 = arith.mulf %18, %9 : vector<16x1xf32>
    %cst_12 = arith.constant -1.000000e+00 : f32
    %cst_13 = arith.constant 1.000000e+00 : f32
    %20 = vector.broadcast %cst_12 : f32 to vector<16x1xf32>
    %21 = arith.maximumf %20, %19 : vector<16x1xf32>
    %22 = vector.broadcast %cst_13 : f32 to vector<16x1xf32>
    %23 = arith.minimumf %22, %21 : vector<16x1xf32>
    %24 = math.log1p %23 : vector<16x1xf32>
    %cst_14 = arith.constant 0.000000e+00 : f32
    %25 = vector.broadcast %cst_14 : f32 to vector<16x1xf32>
    %26 = arith.subf %25, %23 : vector<16x1xf32>
    %27 = math.log1p %26 : vector<16x1xf32>
    %28 = arith.subf %24, %27 : vector<16x1xf32>
    %cst_15 = arith.constant 5.000000e-01 : f32
    %29 = vector.broadcast %cst_15 : f32 to vector<16x1xf32>
    %30 = arith.mulf %29, %28 : vector<16x1xf32>
    %31 = arith.mulf %17, %30 : vector<16x1xf32>
    %32 = math.tanh %31 : vector<16x1xf32>
    %cst_16 = arith.constant 0.000000e+00 : f32
    %33 = vector.broadcast %cst_16 : f32 to vector<16x1xf32>
    %34 = arith.cmpf oeq, %13, %33 : vector<16x1xf32>
    %cst_17 = arith.constant 1.000000e+00 : f32
    %35 = vector.broadcast %cst_17 : f32 to vector<16x1xf32>
    %36 = arith.divf %32, %35 : vector<16x1xf32>
    %cst_18 = arith.constant 1.000000e-15 : f32
    %37 = vector.broadcast %cst_18 : f32 to vector<16x1xf32>
    %38 = arith.maximumf %36, %37 : vector<16x1xf32>
    %cst_19 = arith.constant 0.995999991 : f32
    %39 = vector.broadcast %cst_19 : f32 to vector<16x1xf32>
    %40 = arith.minimumf %38, %39 : vector<16x1xf32>
    %cst_20 = arith.constant 0.000000e+00 : f32
    %41 = vector.broadcast %cst_20 : f32 to vector<16x1xf32>
    %42 = arith.select %34, %41, %40 : vector<16x1xi1>, vector<16x1xf32>
    %43 = arith.divf %42, %16 : vector<16x1xf32>
    %44 = arith.mulf %42, %42 : vector<16x1xf32>
    %45 = vector.broadcast %2 : vector<1x128xf32> to vector<16x128xf32>
    %46 = arith.mulf %10, %45 : vector<16x128xf32>
    %cst_21 = arith.constant dense<0.000000e+00> : vector<16xf32>
    %47 = vector.multi_reduction <add>, %46, %cst_21 [1] : vector<16x128xf32> to vector<16xf32>
    %48 = vector.shape_cast %47 : vector<16xf32> to vector<16x1xf32>
    %49 = arith.mulf %43, %48 : vector<16x1xf32>
    %cst_22 = arith.constant 2.000000e+00 : f32
    %50 = vector.broadcast %cst_22 : f32 to vector<16x1xf32>
    %51 = arith.mulf %50, %49 : vector<16x1xf32>
    %cst_23 = arith.constant 1.000000e+00 : f32
    %52 = vector.broadcast %cst_23 : f32 to vector<16x1xf32>
    %53 = arith.addf %52, %51 : vector<16x1xf32>
    %cst_24 = arith.constant 1.000000e+00 : f32
    %54 = vector.broadcast %cst_24 : f32 to vector<16x1xf32>
    %55 = arith.mulf %54, %44 : vector<16x1xf32>
    %56 = vector.broadcast %3 : vector<1x1xf32> to vector<16x1xf32>
    %57 = arith.mulf %55, %56 : vector<16x1xf32>
    %58 = arith.addf %53, %57 : vector<16x1xf32>
    %cst_25 = arith.constant 1.000000e-15 : f32
    %59 = vector.broadcast %cst_25 : f32 to vector<16x1xf32>
    %60 = arith.maximumf %58, %59 : vector<16x1xf32>
    %cst_26 = arith.constant 1.000000e+00 : f32
    %61 = vector.broadcast %cst_26 : f32 to vector<16x1xf32>
    %62 = arith.divf %61, %60 : vector<16x1xf32>
    %cst_27 = arith.constant 1.000000e+00 : f32
    %63 = vector.broadcast %cst_27 : f32 to vector<1x1xf32>
    %64 = arith.mulf %63, %3 : vector<1x1xf32>
    %65 = vector.broadcast %64 : vector<1x1xf32> to vector<16x1xf32>
    %66 = arith.addf %53, %65 : vector<16x1xf32>
    %67 = arith.mulf %66, %43 : vector<16x1xf32>
    %68 = arith.mulf %67, %62 : vector<16x1xf32>
    %cst_28 = arith.constant 1.000000e+00 : f32
    %69 = vector.broadcast %cst_28 : f32 to vector<16x1xf32>
    %70 = arith.mulf %69, %44 : vector<16x1xf32>
    %cst_29 = arith.constant 1.000000e+00 : f32
    %71 = vector.broadcast %cst_29 : f32 to vector<16x1xf32>
    %72 = arith.subf %71, %70 : vector<16x1xf32>
    %73 = arith.mulf %72, %62 : vector<16x1xf32>
    %74 = vector.broadcast %68 : vector<16x1xf32> to vector<16x128xf32>
    %75 = arith.mulf %74, %10 : vector<16x128xf32>
    %76 = vector.broadcast %73 : vector<16x1xf32> to vector<16x128xf32>
    %77 = vector.broadcast %2 : vector<1x128xf32> to vector<16x128xf32>
    %78 = arith.mulf %76, %77 : vector<16x128xf32>
    %79 = arith.addf %75, %78 : vector<16x128xf32>
    %80 = arith.mulf %79, %79 : vector<16x128xf32>
    %cst_30 = arith.constant dense<0.000000e+00> : vector<16xf32>
    %81 = vector.multi_reduction <add>, %80, %cst_30 [1] : vector<16x128xf32> to vector<16xf32>
    %82 = vector.shape_cast %81 : vector<16xf32> to vector<16x1xf32>
    %83 = math.sqrt %82 : vector<16x1xf32>
    %cst_31 = arith.constant 1.000000e-15 : f32
    %84 = vector.broadcast %cst_31 : f32 to vector<16x1xf32>
    %85 = arith.maximumf %83, %84 : vector<16x1xf32>
    %cst_32 = arith.constant 0.995999991 : f32
    %86 = vector.broadcast %cst_32 : f32 to vector<16x1xf32>
    %87 = arith.cmpf ogt, %85, %86 : vector<16x1xf32>
    %cst_33 = arith.constant 0.995999991 : f32
    %88 = vector.broadcast %cst_33 : f32 to vector<16x1xf32>
    %89 = arith.divf %88, %85 : vector<16x1xf32>
    %cst_34 = arith.constant 1.000000e+00 : f32
    %90 = vector.broadcast %cst_34 : f32 to vector<16x1xf32>
    %91 = arith.select %87, %89, %90 : vector<16x1xi1>, vector<16x1xf32>
    %cst_35 = arith.constant 0.995999991 : f32
    %92 = vector.broadcast %cst_35 : f32 to vector<16x1xf32>
    %93 = arith.minimumf %85, %92 : vector<16x1xf32>
    %cst_36 = arith.constant 1.000000e+00 : f32
    %94 = vector.broadcast %cst_36 : f32 to vector<16x1xf32>
    %95 = arith.mulf %94, %93 : vector<16x1xf32>
    %cst_37 = arith.constant -1.000000e+00 : f32
    %cst_38 = arith.constant 1.000000e+00 : f32
    %96 = vector.broadcast %cst_37 : f32 to vector<16x1xf32>
    %97 = arith.maximumf %96, %95 : vector<16x1xf32>
    %98 = vector.broadcast %cst_38 : f32 to vector<16x1xf32>
    %99 = arith.minimumf %98, %97 : vector<16x1xf32>
    %100 = math.log1p %99 : vector<16x1xf32>
    %cst_39 = arith.constant 0.000000e+00 : f32
    %101 = vector.broadcast %cst_39 : f32 to vector<16x1xf32>
    %102 = arith.subf %101, %99 : vector<16x1xf32>
    %103 = math.log1p %102 : vector<16x1xf32>
    %104 = arith.subf %100, %103 : vector<16x1xf32>
    %cst_40 = arith.constant 5.000000e-01 : f32
    %105 = vector.broadcast %cst_40 : f32 to vector<16x1xf32>
    %106 = arith.mulf %105, %104 : vector<16x1xf32>
    %cst_41 = arith.constant 1.000000e+00 : f32
    %107 = vector.broadcast %cst_41 : f32 to vector<16x1xf32>
    %108 = arith.mulf %107, %93 : vector<16x1xf32>
    %109 = arith.divf %106, %108 : vector<16x1xf32>
    %cst_42 = arith.constant 0.000000e+00 : f32
    %110 = vector.broadcast %cst_42 : f32 to vector<16x128xf32>
    %111 = arith.maximumf %79, %110 : vector<16x128xf32>
    %112 = arith.mulf %111, %111 : vector<16x128xf32>
    %cst_43 = arith.constant dense<0.000000e+00> : vector<16xf32>
    %113 = vector.multi_reduction <add>, %112, %cst_43 [1] : vector<16x128xf32> to vector<16xf32>
    %114 = vector.shape_cast %113 : vector<16xf32> to vector<16x1xf32>
    %115 = math.sqrt %114 : vector<16x1xf32>
    %116 = arith.mulf %109, %91 : vector<16x1xf32>
    %117 = arith.mulf %116, %115 : vector<16x1xf32>
    %cst_44 = arith.constant 1.000000e-15 : f32
    %118 = vector.broadcast %cst_44 : f32 to vector<16x1xf32>
    %119 = arith.maximumf %117, %118 : vector<16x1xf32>
    %cst_45 = arith.constant 1.000000e+00 : f32
    %120 = vector.broadcast %cst_45 : f32 to vector<16x1xf32>
    %121 = arith.mulf %120, %119 : vector<16x1xf32>
    %122 = math.tanh %121 : vector<16x1xf32>
    %cst_46 = arith.constant 1.000000e+00 : f32
    %123 = vector.broadcast %cst_46 : f32 to vector<16x1xf32>
    %124 = arith.divf %122, %123 : vector<16x1xf32>
    %cst_47 = arith.constant 1.000000e-15 : f32
    %125 = vector.broadcast %cst_47 : f32 to vector<16x1xf32>
    %126 = arith.maximumf %124, %125 : vector<16x1xf32>
    %127 = arith.divf %122, %121 : vector<16x1xf32>
    %128 = arith.mulf %109, %91 : vector<16x1xf32>
    %129 = arith.mulf %127, %128 : vector<16x1xf32>
    %cst_48 = arith.constant 0.995999991 : f32
    %130 = vector.broadcast %cst_48 : f32 to vector<16x1xf32>
    %131 = arith.cmpf ogt, %126, %130 : vector<16x1xf32>
    %cst_49 = arith.constant 0.995999991 : f32
    %132 = vector.broadcast %cst_49 : f32 to vector<16x1xf32>
    %133 = arith.divf %132, %126 : vector<16x1xf32>
    %cst_50 = arith.constant 1.000000e+00 : f32
    %134 = vector.broadcast %cst_50 : f32 to vector<16x1xf32>
    %135 = arith.select %131, %133, %134 : vector<16x1xi1>, vector<16x1xf32>
    %136 = arith.mulf %129, %135 : vector<16x1xf32>
    %137 = vector.broadcast %136 : vector<16x1xf32> to vector<16x128xf32>
    %138 = arith.mulf %111, %137 : vector<16x128xf32>
    %c0_51 = arith.constant 0 : index
    %c0_52 = arith.constant 0 : index
    %139 = vector.load %arg5[%c0_51, %c0_52] : memref<16x128xf32, #tpu.memory_space<vmem>>, vector<16x128xf32>
    tpu.vector_store %arg5[%c0_51, %c0_52], %138 {strides = array<i32>} : memref<16x128xf32, #tpu.memory_space<vmem>>, vector<16x128xf32>,
    return
  }
  func.func @transform_0(%arg0: i32) -> (i32, i32) {
    %c0_i32 = arith.constant 0 : i32
    %c0_i32_0 = arith.constant 0 : i32
    return %arg0, %c0_i32 : i32, i32
  }
  func.func @transform_1(%arg0: i32) -> (i32, i32) {
    %c0_i32 = arith.constant 0 : i32
    %c0_i32_0 = arith.constant 0 : i32
    %c0_i32_1 = arith.constant 0 : i32
    return %c0_i32, %c0_i32_0 : i32, i32
  }
  func.func @transform_2(%arg0: i32) -> (i32, i32) {
    %c0_i32 = arith.constant 0 : i32
    %c0_i32_0 = arith.constant 0 : i32
    %c0_i32_1 = arith.constant 0 : i32
    return %c0_i32, %c0_i32_0 : i32, i32
  }
  func.func @transform_3(%arg0: i32) -> (i32, i32) {
    %c0_i32 = arith.constant 0 : i32
    %c0_i32_0 = arith.constant 0 : i32
    %c0_i32_1 = arith.constant 0 : i32
    return %c0_i32, %c0_i32_0 : i32, i32
  }
  func.func @transform_4(%arg0: i32) -> (i32, i32) {
    %c0_i32 = arith.constant 0 : i32
    %c0_i32_0 = arith.constant 0 : i32
    return %arg0, %c0_i32 : i32, i32
  }
}

</mosaic_0001>

<llo_original>
// kernel: tpu_custom_call.1
$region0: #{tpu_custom_call.1}
  #allocation0 [shape = 'u32[]', space=smem, size = 0x4, offset = 0x4, fixed_abs, tag = 'smem constant byte address 0x4 - core index']
  #allocation1 [shape = 'u32[72,128]{1,0:T(1,128)}', space=vmem, size = 0x9000, scoped, tag = 'internal scratch']
  #allocation2 [shape = 'f32[1,1]{1,0:T(1,128)S(1)}', space=vmem, size = 0x200, scoped, tag = 'scoped memory for tpu_custom_call.1']
  %s0 = inlined_call_operand.hbm [shape: f32[32,128], index: 0, kind: input, shape index: {}]
  %s1 = inlined_call_operand.hbm [shape: f32[128,128], index: 1, kind: input, shape index: {}]
  %s2 = inlined_call_operand.vmem [shape: f32[1,128], index: 2, kind: input, shape index: {}]
  %s3 = inlined_call_operand.<no memory space> [shape: f32[1,1], index: 3, kind: input, shape index: {}]
  %s4 = inlined_call_operand.hbm [shape: f32[32,128], index: 4, kind: output, shape index: {}]
  %s5 = sld [smem:[#allocation0]]
  $region57: #{tpu_custom_call.1} parent=0
    _
  %s7 = ssub.s32 1, %s5
  %s8 = scalar_select 0, %s7, %s5
  %v9 = vstv %s3
  %10 = vst [vmem:[#allocation2] sm:$0x1] %v9
  $region1: #{tpu_custom_call.1} parent=0
    #allocation3 [shape = 'u8[16384]{0}', space=vmem, size = 0x4000, scoped, tag = 'input window, operand 0']
    #allocation4 [shape = 's32[2]{0}', space=sflag, size = 0x8, scoped, tag = 'scoped memory for tpu_custom_call.1']
    #allocation5 [shape = 's32[2]{0}', space=sflag, size = 0x8, scoped, tag = 'scoped memory for tpu_custom_call.1']
    #allocation6 [shape = 'u8[65536]{0}', space=vmem, size = 0x10000, scoped, tag = 'input window, operand 1, single buffered']
    #allocation7 [shape = 's32[1]{0}', space=sflag, size = 0x4, scoped, tag = 'scoped memory for tpu_custom_call.1']
    #allocation8 [shape = 'u8[16384]{0}', space=vmem, size = 0x4000, scoped, tag = 'output window, operand 0']
    %11 = vsyncpa [#allocation4], 0
    %s12 = scalar_lea.sflag [#allocation4], 1
    %13 = vsyncpa %s12, 0
    %14 = vsyncpa [#allocation7], 0
    %15 = vsyncpa [#allocation5], 0
    %s16 = scalar_lea.sflag [#allocation5], 1
    %17 = vsyncpa %s16, 0
    loop: start=0, step=1, limit=4
    $region2: #{tpu_custom_call.1} parent=1 // loop_pre_header
      _
    $region3: #{tpu_custom_call.1} parent=1 // loop_header
      %s19 = sphi 0, %s23
      %p20 = scmp.ge.s32.totalorder %s19, 4
      %s29 = sphi 0, %s31
      %s32 = sphi 0, %s29
      %s33 = sphi 0, %s32
      %s49 = sphi 0, %s33
      %s53 = sphi 0, %s53
      %s55 = sphi 0, %s53
      %s56 = sphi 0, %s55
      %s70 = sphi 0, %s56
      %s74 = sphi 0, %s74
      %s76 = sphi 0, %s74
      %s77 = sphi 0, %s76
      %s91 = sphi 0, %s77
      %s95 = sphi 0, %s95
      %s97 = sphi 0, %s95
      %s98 = sphi 0, %s97
      %s112 = sphi 0, %s98
      %s118 = sphi 0, %s120
      %s121 = sphi 0, %s118
      %s122 = sphi 0, %s121
      %s138 = sphi 0, %s122
    $region4: #{tpu_custom_call.1} parent=1 // loop_header_branch
      %22 = sbr.rel (%p20) target = $region8
    $region5: #{tpu_custom_call.1} parent=1 // loop_body
      %s24 = ssub.s32 %s19, 1
      %s25 = ssub.s32 %s19, 2
      %s26 = sadd.s32 %s19, 1
      %s27 = ssub.s32 %s19, %s26
      %p28 = scmp.eq.s32.totalorder %s27, 0
      %s30 = sadd.s32 %s29, 1
      %s31 = scalar_select %p28, %s29, %s30
      %p34 = pneg %p28
      %p35 = scmp.eq.s32.totalorder %s19, 1
      %p36 = por %p34, %p35
      %p37 = scmp.ne.s32.totalorder %s29, %s32
      %p38 = scmp.eq.s32.totalorder %s19, 0
      %p39 = por %p37, %p38
      %p40 = scmp.ne.s32.totalorder %s29, %s32
      %p41 = scmp.eq.s32.totalorder %s24, 1
      %p42 = por %p40, %p41
      %p43 = scmp.ne.s32.totalorder %s32, %s33
      %p44 = scmp.eq.s32.totalorder %s24, 0
      %p45 = por %p43, %p44
      %p46 = scmp.ne.s32.totalorder %s32, %s33
      %p47 = scmp.eq.s32.totalorder %s25, 1
      %p48 = por %p46, %p47
      %p50 = scmp.ne.s32.totalorder %s33, %s49
      %p51 = scmp.eq.s32.totalorder %s25, 0
      %p52 = por %p50, %p51
      %s54 = sadd.s32 %s53, 1
      %p57 = scmp.eq.s32.totalorder %s19, 1
      %p58 = scmp.ne.s32.totalorder %s53, %s55
      %p59 = scmp.eq.s32.totalorder %s19, 0
      %p60 = por %p58, %p59
      %p61 = scmp.ne.s32.totalorder %s53, %s55
      %p62 = scmp.eq.s32.totalorder %s24, 1
      %p63 = por %p61, %p62
      %p64 = scmp.ne.s32.totalorder %s55, %s56
      %p65 = scmp.eq.s32.totalorder %s24, 0
      %p66 = por %p64, %p65
      %p67 = scmp.ne.s32.totalorder %s55, %s56
      %p68 = scmp.eq.s32.totalorder %s25, 1
      %p69 = por %p67, %p68
      %p71 = scmp.ne.s32.totalorder %s56, %s70
      %p72 = scmp.eq.s32.totalorder %s25, 0
      %p73 = por %p71, %p72
      %s75 = sadd.s32 %s74, 1
      %p78 = scmp.eq.s32.totalorder %s19, 1
      %p79 = scmp.ne.s32.totalorder %s74, %s76
      %p80 = scmp.eq.s32.totalorder %s19, 0
      %p81 = por %p79, %p80
      %p82 = scmp.ne.s32.totalorder %s74, %s76
      %p83 = scmp.eq.s32.totalorder %s24, 1
      %p84 = por %p82, %p83
      %p85 = scmp.ne.s32.totalorder %s76, %s77
      %p86 = scmp.eq.s32.totalorder %s24, 0
      %p87 = por %p85, %p86
      %p88 = scmp.ne.s32.totalorder %s76, %s77
      %p89 = scmp.eq.s32.totalorder %s25, 1
      %p90 = por %p88, %p89
      %p92 = scmp.ne.s32.totalorder %s77, %s91
      %p93 = scmp.eq.s32.totalorder %s25, 0
      %p94 = por %p92, %p93
      %s96 = sadd.s32 %s95, 1
      %p99 = scmp.eq.s32.totalorder %s19, 1
      %p100 = scmp.ne.s32.totalorder %s95, %s97
      %p101 = scmp.eq.s32.totalorder %s19, 0
      %p102 = por %p100, %p101
      %p103 = scmp.ne.s32.totalorder %s95, %s97
      %p104 = scmp.eq.s32.totalorder %s24, 1
      %p105 = por %p103, %p104
      %p106 = scmp.ne.s32.totalorder %s97, %s98
      %p107 = scmp.eq.s32.totalorder %s24, 0
      %p108 = por %p106, %p107
      %p109 = scmp.ne.s32.totalorder %s97, %s98
      %p110 = scmp.eq.s32.totalorder %s25, 1
      %p111 = por %p109, %p110
      %p113 = scmp.ne.s32.totalorder %s98, %s112
      %p114 = scmp.eq.s32.totalorder %s25, 0
      %p115 = por %p113, %p114
      %s116 = ssub.s32 %s19, %s26
      %p117 = scmp.eq.s32.totalorder %s116, 0
      %s119 = sadd.s32 %s118, 1
      %s120 = scalar_select %p117, %s118, %s119
      %p123 = pneg %p117
      %p124 = scmp.eq.s32.totalorder %s19, 1
      %p125 = por %p123, %p124
      %p126 = scmp.ne.s32.totalorder %s118, %s121
      %p127 = scmp.eq.s32.totalorder %s19, 0
      %p128 = por %p126, %p127
      %p129 = scmp.ne.s32.totalorder %s118, %s121
      %p130 = scmp.eq.s32.totalorder %s24, 1
      %p131 = por %p129, %p130
      %p132 = scmp.ne.s32.totalorder %s121, %s122
      %p133 = scmp.eq.s32.totalorder %s24, 0
      %p134 = por %p132, %p133
      %p135 = scmp.ne.s32.totalorder %s121, %s122
      %p136 = scmp.eq.s32.totalorder %s25, 1
      %p137 = por %p135, %p136
      %p139 = scmp.ne.s32.totalorder %s122, %s138
      %p140 = scmp.eq.s32.totalorder %s25, 0
      %p141 = por %p139, %p140
      %p142 = scmp.le.s32.totalorder 1, %s19
      %p143 = scmp.lt.s32.totalorder %s19, 3
      %p144 = pnand %p142, %p143
      %p145 = pneg %p144
      // Predicated region
      $region9: #{tpu_custom_call.1} parent=5 // pred_check
        _
      $region10: #{tpu_custom_call.1} parent=5 // pred_check_branch
        %147 = sbr.rel (%p144) target = $region12
      $region11: #{tpu_custom_call.1} parent=5 // pred_region
        %s148 = ssub.s32 %s19, 1
        // Predicated region
        $region13: #{tpu_custom_call.1} parent=11 // pred_check
          %p149 = pneg %p66
        $region14: #{tpu_custom_call.1} parent=11 // pred_check_branch
          %151 = sbr.rel (%p149) target = $region16
        $region15: #{tpu_custom_call.1} parent=11 // pred_region
          %153 = vsyncadd [#allocation7], 0
          %s154 = sshll.u32 %s1, 4
          %s155 = int_to_ptr.hbm [resolvable:$true] %s154
          %s156 = sshll.u32 [#allocation6], 4
          %s157 = int_to_ptr.vmem [resolvable:$true] %s156
          %162 = dma.hbm_to_vmem [thread:$0]  %s155, 2048, %s157, [#allocation7], 128, 128, 8
        $region16: #{tpu_custom_call.1} parent=11 // pred_fallthru
          _
        // Predicated region
        $region17: #{tpu_custom_call.1} parent=11 // pred_check
          %p163 = pneg %p87
        $region18: #{tpu_custom_call.1} parent=11 // pred_check_branch
          %165 = sbr.rel (%p163) target = $region20
        $region19: #{tpu_custom_call.1} parent=11 // pred_region
          _
        $region20: #{tpu_custom_call.1} parent=11 // pred_fallthru
          _
        // Predicated region
        $region21: #{tpu_custom_call.1} parent=11 // pred_check
          %p166 = pneg %p108
        $region22: #{tpu_custom_call.1} parent=11 // pred_check_branch
          %168 = sbr.rel (%p166) target = $region24
        $region23: #{tpu_custom_call.1} parent=11 // pred_region
          _
        $region24: #{tpu_custom_call.1} parent=11 // pred_fallthru
          _
      $region12: #{tpu_custom_call.1} parent=5 // pred_fallthru
        _
      %p169 = scmp.lt.s32.totalorder %s19, 2
      // Predicated region
      $region25: #{tpu_custom_call.1} parent=5 // pred_check
        %p170 = pneg %p169
      $region26: #{tpu_custom_call.1} parent=5 // pred_check_branch
        %172 = sbr.rel (%p170) target = $region28
      $region27: #{tpu_custom_call.1} parent=5 // pred_region
        // Predicated region
        $region29: #{tpu_custom_call.1} parent=27 // pred_check
          %p173 = pneg %p39
        $region30: #{tpu_custom_call.1} parent=27 // pred_check_branch
          %175 = sbr.rel (%p173) target = $region32
        $region31: #{tpu_custom_call.1} parent=27 // pred_region
          %s176 = sand.u32 %s29, 1
          %s177 = scalar_lea.sflag [#allocation4], %s176
          %s178 = sand.u32 %s29, 1
          %s179 = smul.addr %s178, 16
          %s180 = scalar_lea.vmem [#allocation3], %s179
          %s181 = smul.u32 2, %s19
          %183 = vsyncadd %s177, 0
          %s184 = smul.addr %s181, 8
          %s185 = scalar_lea.hbm %s0, %s184
          %s186 = sshll.u32 %s185, 4
          %s187 = int_to_ptr.hbm [resolvable:$true] %s186
          %s188 = sshll.u32 %s180, 4
          %s189 = int_to_ptr.vmem [resolvable:$true] %s188
          %194 = dma.hbm_to_vmem [thread:$0]  %s187, 256, %s189, %s177, 128, 128, 8
        $region32: #{tpu_custom_call.1} parent=27 // pred_fallthru
          _
      $region28: #{tpu_custom_call.1} parent=5 // pred_fallthru
        _
      %p195 = scmp.le.s32.totalorder 1, %s19
      %p196 = scmp.lt.s32.totalorder %s19, 3
      %p197 = pnand %p195, %p196
      %p198 = pneg %p197
      // Predicated region
      $region33: #{tpu_custom_call.1} parent=5 // pred_check
        _
      $region34: #{tpu_custom_call.1} parent=5 // pred_check_branch
        %200 = sbr.rel (%p197) target = $region36
      $region35: #{tpu_custom_call.1} parent=5 // pred_region
        %s201 = ssub.s32 %s19, 1
        %s202 = sand.u32 %s32, 1
        %s203 = scalar_lea.sflag [#allocation4], %s202
        %s204 = sand.u32 %s32, 1
        %s205 = smul.addr %s204, 16
        %s206 = scalar_lea.vmem [#allocation3], %s205
        // Predicated region
        $region37: #{tpu_custom_call.1} parent=35 // pred_check
          %p207 = pneg %p45
        $region38: #{tpu_custom_call.1} parent=35 // pred_check_branch
          %209 = sbr.rel (%p207) target = $region40
        $region39: #{tpu_custom_call.1} parent=35 // pred_region
          %211 = dma.done %s203, 256
        $region40: #{tpu_custom_call.1} parent=35 // pred_fallthru
          _
        // Predicated region
        $region41: #{tpu_custom_call.1} parent=35 // pred_check
          %p212 = pneg %p66
        $region42: #{tpu_custom_call.1} parent=35 // pred_check_branch
          %214 = sbr.rel (%p212) target = $region44
        $region43: #{tpu_custom_call.1} parent=35 // pred_region
          %216 = dma.done [#allocation7], 2048
        $region44: #{tpu_custom_call.1} parent=35 // pred_fallthru
          _
        %s217 = sand.u32 %s32, 1
        %s218 = scalar_lea.sflag [#allocation4], %s217
        %s219 = sand.u32 %s32, 1
        %s220 = smul.addr %s219, 16
        %s221 = scalar_lea.vmem [#allocation3], %s220
        %p222 = pneg %p45
        %p223 = pneg %p42
        %p224 = pneg %p66
        %p225 = pneg %p63
        %p226 = pneg %p87
        %p227 = pneg %p84
        %p228 = pneg %p108
        %p229 = pneg %p105
        %p230 = pneg %p134
        %p231 = pneg %p131
        %s232 = sand.u32 %s121, 1
        %s233 = scalar_lea.sflag [#allocation5], %s232
        %s234 = sand.u32 %s121, 1
        %s235 = smul.addr %s234, 16
        %s236 = scalar_lea.vmem [#allocation8], %s235
        %s237 = smul.u32 2, %s24
        %s238 = smul.u32 2, %s24
        %v239 = vld [vmem:[%s206] sm:$0xff]
        %v240 = vld [vmem:[%s206 + $0x8] sm:$0xff]
        %v241 = vld [vmem:[#allocation6] sm:$0xff]
        %v242 = vld [vmem:[#allocation6 + $0x8] sm:$0xff]
        %v243 = vld [vmem:[#allocation6 + $0x10] sm:$0xff]
        %v244 = vld [vmem:[#allocation6 + $0x18] sm:$0xff]
        %v245 = vld [vmem:[#allocation6 + $0x20] sm:$0xff]
        %v246 = vld [vmem:[#allocation6 + $0x28] sm:$0xff]
        %v247 = vld [vmem:[#allocation6 + $0x30] sm:$0xff]
        %v248 = vld [vmem:[#allocation6 + $0x38] sm:$0xff]
        %v249 = vld [vmem:[#allocation6 + $0x40] sm:$0xff]
        %v250 = vld [vmem:[#allocation6 + $0x48] sm:$0xff]
        %v251 = vld [vmem:[#allocation6 + $0x50] sm:$0xff]
        %v252 = vld [vmem:[#allocation6 + $0x58] sm:$0xff]
        %v253 = vld [vmem:[#allocation6 + $0x60] sm:$0xff]
        %v254 = vld [vmem:[#allocation6 + $0x68] sm:$0xff]
        %v255 = vld [vmem:[#allocation6 + $0x70] sm:$0xff]
        %v256 = vld [vmem:[#allocation6 + $0x78] sm:$0xff]
        %v257 = vld [vmem:[%s2] sm:$0x1]
        %v258 = vld [vmem:[#allocation2] sm:$0x1]
        %v259 = vmul.f32 %v239, %v239
        %v260 = vmul.f32 %v240, %v240
        %261 = vadd.xlane.f32.xlu0 %v259
        %v262 = vpop.xlane.xlu0 %261
        %263 = vadd.xlane.f32.xlu0 %v260
        %v264 = vpop.xlane.xlu0 %263
        %v265 = vrsqrt.pop %v262
        %v266 = vmul.f32 %v265, %v262
        %v267 = vmul.f32 %v266, %v265
        %v268 = vmul.f32 0.5, %v267
        %v269 = vsub.f32 1.5, %v268
        %v270 = vmul.f32 %v265, %v269
        %v271 = vmul.f32 %v262, %v270
        %vm272 = vcmp.eq.f32.partialorder %v262, inf
        %v273 = vsel %vm272, %v262, %v271
        %vm274 = vcmp.eq.f32.partialorder %v262, 0.0
        %v275 = vand.u32 %v262, 2147483648
        %v276 = vsel %vm274, %v275, %v273
        %v277 = vrsqrt.pop %v264
        %v278 = vmul.f32 %v277, %v264
        %v279 = vmul.f32 %v278, %v277
        %v280 = vmul.f32 0.5, %v279
        %v281 = vsub.f32 1.5, %v280
        %v282 = vmul.f32 %v277, %v281
        %v283 = vmul.f32 %v264, %v282
        %vm284 = vcmp.eq.f32.partialorder %v264, inf
        %v285 = vsel %vm284, %v264, %v283
        %vm286 = vcmp.eq.f32.partialorder %v264, 0.0
        %v287 = vand.u32 %v264, 2147483648
        %v288 = vsel %vm286, %v287, %v285
        %v289 = vmax.f32 %v276, 1e-15
        %v290 = vmax.f32 %v288, 1e-15
        %291 = vmatpush.xpose.msra.mxu0 %v256
        %292 = vmatpush.xpose.msra.mxu0 %v255
        %293 = vmatpush.xpose.msra.mxu0 %v254
        %294 = vmatpush.xpose.msra.mxu0 %v253
        %295 = vmatpush.xpose.msra.mxu0 %v252
        %296 = vmatpush.xpose.msra.mxu0 %v251
        %297 = vmatpush.xpose.msra.mxu0 %v250
        %298 = vmatpush.xpose.msra.mxu0 %v249
        %299 = vmatpush.xpose.msra.mxu0 %v248
        %300 = vmatpush.xpose.msra.mxu0 %v247
        %301 = vmatpush.xpose.msra.mxu0 %v246
        %302 = vmatpush.xpose.msra.mxu0 %v245
        %303 = vmatpush.xpose.msra.mxu0 %v244
        %304 = vmatpush.xpose.msra.mxu0 %v243
        %305 = vmatpush.xpose.msra.mxu0 %v242
        %306 = vmatpush.xpose.msra.mxu0 %v241
        %307 = vmatmul.f32.gmra.mxu0 %v239
        %v308 = vpop.f32.mrf.mxu0
        %v309 = vadd.f32 0.0, %v308
        %310 = vmatmul.f32.gmra.mxu0 %v240
        %v311 = vpop.f32.mrf.mxu0
        %v312 = vadd.f32 0.0, %v311
        %313 = vdwg.mxu0
        %v314 = vmul.f32 %v309, %v309
        %v315 = vmul.f32 %v312, %v312
        %316 = vadd.xlane.f32.xlu0 %v314
        %v317 = vpop.xlane.xlu0 %316
        %318 = vadd.xlane.f32.xlu0 %v315
        %v319 = vpop.xlane.xlu0 %318
        %v320 = vrsqrt.pop %v317
        %v321 = vmul.f32 %v320, %v317
        %v322 = vmul.f32 %v321, %v320
        %v323 = vmul.f32 0.5, %v322
        %v324 = vsub.f32 1.5, %v323
        %v325 = vmul.f32 %v320, %v324
        %v326 = vmul.f32 %v317, %v325
        %vm327 = vcmp.eq.f32.partialorder %v317, inf
        %v328 = vsel %vm327, %v317, %v326
        %vm329 = vcmp.eq.f32.partialorder %v317, 0.0
        %v330 = vand.u32 %v317, 2147483648
        %v331 = vsel %vm329, %v330, %v328
        %v332 = vrsqrt.pop %v319
        %v333 = vmul.f32 %v332, %v319
        %v334 = vmul.f32 %v333, %v332
        %v335 = vmul.f32 0.5, %v334
        %v336 = vsub.f32 1.5, %v335
        %v337 = vmul.f32 %v332, %v336
        %v338 = vmul.f32 %v319, %v337
        %vm339 = vcmp.eq.f32.partialorder %v319, inf
        %v340 = vsel %vm339, %v319, %v338
        %vm341 = vcmp.eq.f32.partialorder %v319, 0.0
        %v342 = vand.u32 %v319, 2147483648
        %v343 = vsel %vm341, %v342, %v340
        %v344 = vmax.f32 %v331, 1e-15
        %v345 = vmax.f32 %v343, 1e-15
        %v346 = vrcp.pop %v289
        %v347 = vmul.f32 %v289, %v346
        %v348 = vsub.f32 1.0, %v347
        %v349 = vmul.f32 %v346, %v348
        %v350 = vadd.f32 %v346, %v349
        %vm351 = vweird.f32 %v289
        %vm352 = vweird.f32 %v346
        %vm353 = vmor %vm351, %vm352
        %v354 = vsel %vm353, %v346, %v350
        %v355 = vand.u32 2147483647, %v289
        %vm356 = vcmp.eq.f32.partialorder %v355, 8.507059e+37
        %v357 = vand.u32 %v289, 2147483648
        %v358 = vor.u32 1.1754944e-38, %v357
        %v359 = vsel %vm356, %v358, %v354
        %v360 = vmul.f32 %v344, %v359
        %v361 = vrcp.pop %v290
        %v362 = vmul.f32 %v290, %v361
        %v363 = vsub.f32 1.0, %v362
        %v364 = vmul.f32 %v361, %v363
        %v365 = vadd.f32 %v361, %v364
        %vm366 = vweird.f32 %v290
        %vm367 = vweird.f32 %v361
        %vm368 = vmor %vm366, %vm367
        %v369 = vsel %vm368, %v361, %v365
        %v370 = vand.u32 2147483647, %v290
        %vm371 = vcmp.eq.f32.partialorder %v370, 8.507059e+37
        %v372 = vand.u32 %v290, 2147483648
        %v373 = vor.u32 1.1754944e-38, %v372
        %v374 = vsel %vm371, %v373, %v369
        %v375 = vmul.f32 %v345, %v374
        %v376 = vmax.f32 %v289, -1.0
        %v377 = vmax.f32 %v290, -1.0
        %v378 = vmin.f32 %v376, 1.0
        %v379 = vmin.f32 %v377, 1.0
        %v380 = vadd.f32 %v378, 1.0
        %v381 = vlog2.pop %v380
        %v382 = vmul.f32 %v381, 0.6931472
        %v383 = vmul.f32 -0.5, %v378
        %v384 = vadd.f32 %v383, 1.0
        %v385 = vmul.f32 %v384, %v378
        %v386 = vand.u32 2147483647, %v378
        %vm387 = vcmp.lt.f32.partialorder %v386, 0.0004427343
        %v388 = vsel %vm387, %v385, %v382
        %v389 = vadd.f32 %v379, 1.0
        %v390 = vlog2.pop %v389
        %v391 = vmul.f32 %v390, 0.6931472
        %v392 = vmul.f32 -0.5, %v379
        %v393 = vadd.f32 %v392, 1.0
        %v394 = vmul.f32 %v393, %v379
        %v395 = vand.u32 2147483647, %v379
        %vm396 = vcmp.lt.f32.partialorder %v395, 0.0004427343
        %v397 = vsel %vm396, %v394, %v391
        %v398 = vsub.f32 0.0, %v378
        %v399 = vsub.f32 0.0, %v379
        %v400 = vadd.f32 %v398, 1.0
        %v401 = vlog2.pop %v400
        %v402 = vmul.f32 %v401, 0.6931472
        %v403 = vmul.f32 -0.5, %v398
        %v404 = vadd.f32 %v403, 1.0
        %v405 = vmul.f32 %v404, %v398
        %v406 = vand.u32 2147483647, %v398
        %vm407 = vcmp.lt.f32.partialorder %v406, 0.0004427343
        %v408 = vsel %vm407, %v405, %v402
        %v409 = vadd.f32 %v399, 1.0
        %v410 = vlog2.pop %v409
        %v411 = vmul.f32 %v410, 0.6931472
        %v412 = vmul.f32 -0.5, %v399
        %v413 = vadd.f32 %v412, 1.0
        %v414 = vmul.f32 %v413, %v399
        %v415 = vand.u32 2147483647, %v399
        %vm416 = vcmp.lt.f32.partialorder %v415, 0.0004427343
        %v417 = vsel %vm416, %v414, %v411
        %v418 = vsub.f32 %v388, %v408
        %v419 = vsub.f32 %v397, %v417
        %v420 = vmul.f32 %v418, 0.5
        %v421 = vmul.f32 %v419, 0.5
        %v422 = vmul.f32 %v360, %v420
        %v423 = vmul.f32 %v375, %v421
        %v424 = vtanh.pop %v422
        %v425 = vtanh.pop %v423
        %vm426 = vcmp.eq.f32.partialorder %v317, 0.0
        %vm427 = vcmp.eq.f32.partialorder %v319, 0.0
        %v428 = vmax.f32 %v424, 1e-15
        %v429 = vmax.f32 %v425, 1e-15
        %v430 = vmin.f32 %v428, 0.996
        %v431 = vmin.f32 %v429, 0.996
        %v432 = vsel %vm426, 0.0, %v430
        %v433 = vsel %vm427, 0.0, %v431
        %v434 = vrcp.pop %v344
        %v435 = vmul.f32 %v344, %v434
        %v436 = vsub.f32 1.0, %v435
        %v437 = vmul.f32 %v434, %v436
        %v438 = vadd.f32 %v434, %v437
        %vm439 = vweird.f32 %v344
        %vm440 = vweird.f32 %v434
        %vm441 = vmor %vm439, %vm440
        %v442 = vsel %vm441, %v434, %v438
        %v443 = vand.u32 2147483647, %v344
        %vm444 = vcmp.eq.f32.partialorder %v443, 8.507059e+37
        %v445 = vand.u32 %v344, 2147483648
        %v446 = vor.u32 1.1754944e-38, %v445
        %v447 = vsel %vm444, %v446, %v442
        %v448 = vmul.f32 %v432, %v447
        %v449 = vrcp.pop %v345
        %v450 = vmul.f32 %v345, %v449
        %v451 = vsub.f32 1.0, %v450
        %v452 = vmul.f32 %v449, %v451
        %v453 = vadd.f32 %v449, %v452
        %vm454 = vweird.f32 %v345
        %vm455 = vweird.f32 %v449
        %vm456 = vmor %vm454, %vm455
        %v457 = vsel %vm456, %v449, %v453
        %v458 = vand.u32 2147483647, %v345
        %vm459 = vcmp.eq.f32.partialorder %v458, 8.507059e+37
        %v460 = vand.u32 %v345, 2147483648
        %v461 = vor.u32 1.1754944e-38, %v460
        %v462 = vsel %vm459, %v461, %v457
        %v463 = vmul.f32 %v433, %v462
        %v464 = vmul.f32 %v432, %v432
        %v465 = vmul.f32 %v433, %v433
        %v467 = vperm.slane %v257, 0
        %v469 = vmul.f32 %v309, %v467
        %v470 = vmul.f32 %v312, %v467
        %471 = vadd.xlane.f32.xlu0 %v469
        %v472 = vpop.xlane.xlu0 %471
        %473 = vadd.xlane.f32.xlu0 %v470
        %v474 = vpop.xlane.xlu0 %473
        %v475 = vmul.f32 %v448, %v472
        %v476 = vmul.f32 %v463, %v474
        %v477 = vmul.f32 %v475, 2.0
        %v478 = vmul.f32 %v476, 2.0
        %v479 = vadd.f32 %v477, 1.0
        %v480 = vadd.f32 %v478, 1.0
        %v482 = vperm.slane %v258, 0
        %v484 = vmul.f32 %v464, %v482
        %v485 = vmul.f32 %v465, %v482
        %v486 = vadd.f32 %v479, %v484
        %v487 = vadd.f32 %v480, %v485
        %v488 = vmax.f32 %v486, 1e-15
        %v489 = vmax.f32 %v487, 1e-15
        %v490 = vrcp.pop %v488
        %v491 = vmul.f32 %v488, %v490
        %v492 = vsub.f32 1.0, %v491
        %v493 = vmul.f32 %v490, %v492
        %v494 = vadd.f32 %v490, %v493
        %vm495 = vweird.f32 %v488
        %vm496 = vweird.f32 %v490
        %vm497 = vmor %vm495, %vm496
        %v498 = vsel %vm497, %v490, %v494
        %v499 = vand.u32 2147483647, %v488
        %vm500 = vcmp.eq.f32.partialorder %v499, 8.507059e+37
        %v501 = vand.u32 %v488, 2147483648
        %v502 = vor.u32 1.1754944e-38, %v501
        %v503 = vsel %vm500, %v502, %v498
        %v504 = vmul.f32 1.0, %v503
        %v505 = vrcp.pop %v489
        %v506 = vmul.f32 %v489, %v505
        %v507 = vsub.f32 1.0, %v506
        %v508 = vmul.f32 %v505, %v507
        %v509 = vadd.f32 %v505, %v508
        %vm510 = vweird.f32 %v489
        %vm511 = vweird.f32 %v505
        %vm512 = vmor %vm510, %vm511
        %v513 = vsel %vm512, %v505, %v509
        %v514 = vand.u32 2147483647, %v489
        %vm515 = vcmp.eq.f32.partialorder %v514, 8.507059e+37
        %v516 = vand.u32 %v489, 2147483648
        %v517 = vor.u32 1.1754944e-38, %v516
        %v518 = vsel %vm515, %v517, %v513
        %v519 = vmul.f32 1.0, %v518
        %v520 = vadd.f32 %v479, %v482
        %v521 = vadd.f32 %v480, %v482
        %v522 = vmul.f32 %v520, %v448
        %v523 = vmul.f32 %v521, %v463
        %v524 = vmul.f32 %v522, %v504
        %v525 = vmul.f32 %v523, %v519
        %v526 = vsub.f32 1.0, %v464
        %v527 = vsub.f32 1.0, %v465
        %v528 = vmul.f32 %v526, %v504
        %v529 = vmul.f32 %v527, %v519
        %531 = vset.pattern.permute.xlu0 0
        %532 = vperm.xlu0 %531, %v524
        %v533 = vpop.permute.xlu0 %532
        %536 = vset.pattern.permute.xlu0 0
        %537 = vperm.xlu0 %536, %v525
        %v538 = vpop.permute.xlu0 %537
        %v540 = vmul.f32 %v533, %v309
        %v541 = vmul.f32 %v538, %v312
        %543 = vset.pattern.permute.xlu0 0
        %544 = vperm.xlu0 %543, %v528
        %v545 = vpop.permute.xlu0 %544
        %548 = vset.pattern.permute.xlu0 0
        %549 = vperm.xlu0 %548, %v529
        %v550 = vpop.permute.xlu0 %549
        %v552 = vmul.f32 %v545, %v467
        %v553 = vmul.f32 %v550, %v467
        %v554 = vadd.f32 %v540, %v552
        %v555 = vadd.f32 %v541, %v553
        %v556 = vmul.f32 %v554, %v554
        %v557 = vmul.f32 %v555, %v555
        %558 = vadd.xlane.f32.xlu0 %v556
        %v559 = vpop.xlane.xlu0 %558
        %560 = vadd.xlane.f32.xlu0 %v557
        %v561 = vpop.xlane.xlu0 %560
        %v562 = vrsqrt.pop %v559
        %v563 = vmul.f32 %v562, %v559
        %v564 = vmul.f32 %v563, %v562
        %v565 = vmul.f32 0.5, %v564
        %v566 = vsub.f32 1.5, %v565
        %v567 = vmul.f32 %v562, %v566
        %v568 = vmul.f32 %v559, %v567
        %vm569 = vcmp.eq.f32.partialorder %v559, inf
        %v570 = vsel %vm569, %v559, %v568
        %vm571 = vcmp.eq.f32.partialorder %v559, 0.0
        %v572 = vand.u32 %v559, 2147483648
        %v573 = vsel %vm571, %v572, %v570
        %v574 = vrsqrt.pop %v561
        %v575 = vmul.f32 %v574, %v561
        %v576 = vmul.f32 %v575, %v574
        %v577 = vmul.f32 0.5, %v576
        %v578 = vsub.f32 1.5, %v577
        %v579 = vmul.f32 %v574, %v578
        %v580 = vmul.f32 %v561, %v579
        %vm581 = vcmp.eq.f32.partialorder %v561, inf
        %v582 = vsel %vm581, %v561, %v580
        %vm583 = vcmp.eq.f32.partialorder %v561, 0.0
        %v584 = vand.u32 %v561, 2147483648
        %v585 = vsel %vm583, %v584, %v582
        %v586 = vmax.f32 %v573, 1e-15
        %v587 = vmax.f32 %v585, 1e-15
        %vm588 = vcmp.gt.f32.partialorder %v586, 0.996
        %vm589 = vcmp.gt.f32.partialorder %v587, 0.996
        %v590 = vrcp.pop %v586
        %v591 = vmul.f32 %v586, %v590
        %v592 = vsub.f32 1.0, %v591
        %v593 = vmul.f32 %v590, %v592
        %v594 = vadd.f32 %v590, %v593
        %vm595 = vweird.f32 %v586
        %vm596 = vweird.f32 %v590
        %vm597 = vmor %vm595, %vm596
        %v598 = vsel %vm597, %v590, %v594
        %v599 = vand.u32 2147483647, %v586
        %vm600 = vcmp.eq.f32.partialorder %v599, 8.507059e+37
        %v601 = vand.u32 %v586, 2147483648
        %v602 = vor.u32 1.1754944e-38, %v601
        %v603 = vsel %vm600, %v602, %v598
        %v604 = vmul.f32 0.996, %v603
        %v605 = vrcp.pop %v587
        %v606 = vmul.f32 %v587, %v605
        %v607 = vsub.f32 1.0, %v606
        %v608 = vmul.f32 %v605, %v607
        %v609 = vadd.f32 %v605, %v608
        %vm610 = vweird.f32 %v587
        %vm611 = vweird.f32 %v605
        %vm612 = vmor %vm610, %vm611
        %v613 = vsel %vm612, %v605, %v609
        %v614 = vand.u32 2147483647, %v587
        %vm615 = vcmp.eq.f32.partialorder %v614, 8.507059e+37
        %v616 = vand.u32 %v587, 2147483648
        %v617 = vor.u32 1.1754944e-38, %v616
        %v618 = vsel %vm615, %v617, %v613
        %v619 = vmul.f32 0.996, %v618
        %v620 = vsel %vm588, %v604, 1.0
        %v621 = vsel %vm589, %v619, 1.0
        %v622 = vmin.f32 %v586, 0.996
        %v623 = vmin.f32 %v587, 0.996
        %v624 = vmax.f32 %v622, -1.0
        %v625 = vmax.f32 %v623, -1.0
        %v626 = vmin.f32 %v624, 1.0
        %v627 = vmin.f32 %v625, 1.0
        %v628 = vadd.f32 %v626, 1.0
        %v629 = vlog2.pop %v628
        %v630 = vmul.f32 %v629, 0.6931472
        %v631 = vmul.f32 -0.5, %v626
        %v632 = vadd.f32 %v631, 1.0
        %v633 = vmul.f32 %v632, %v626
        %v634 = vand.u32 2147483647, %v626
        %vm635 = vcmp.lt.f32.partialorder %v634, 0.0004427343
        %v636 = vsel %vm635, %v633, %v630
        %v637 = vadd.f32 %v627, 1.0
        %v638 = vlog2.pop %v637
        %v639 = vmul.f32 %v638, 0.6931472
        %v640 = vmul.f32 -0.5, %v627
        %v641 = vadd.f32 %v640, 1.0
        %v642 = vmul.f32 %v641, %v627
        %v643 = vand.u32 2147483647, %v627
        %vm644 = vcmp.lt.f32.partialorder %v643, 0.0004427343
        %v645 = vsel %vm644, %v642, %v639
        %v646 = vsub.f32 0.0, %v626
        %v647 = vsub.f32 0.0, %v627
        %v648 = vadd.f32 %v646, 1.0
        %v649 = vlog2.pop %v648
        %v650 = vmul.f32 %v649, 0.6931472
        %v651 = vmul.f32 -0.5, %v646
        %v652 = vadd.f32 %v651, 1.0
        %v653 = vmul.f32 %v652, %v646
        %v654 = vand.u32 2147483647, %v646
        %vm655 = vcmp.lt.f32.partialorder %v654, 0.0004427343
        %v656 = vsel %vm655, %v653, %v650
        %v657 = vadd.f32 %v647, 1.0
        %v658 = vlog2.pop %v657
        %v659 = vmul.f32 %v658, 0.6931472
        %v660 = vmul.f32 -0.5, %v647
        %v661 = vadd.f32 %v660, 1.0
        %v662 = vmul.f32 %v661, %v647
        %v663 = vand.u32 2147483647, %v647
        %vm664 = vcmp.lt.f32.partialorder %v663, 0.0004427343
        %v665 = vsel %vm664, %v662, %v659
        %v666 = vsub.f32 %v636, %v656
        %v667 = vsub.f32 %v645, %v665
        %v668 = vmul.f32 %v666, 0.5
        %v669 = vmul.f32 %v667, 0.5
        %v670 = vrcp.pop %v622
        %v671 = vmul.f32 %v622, %v670
        %v672 = vsub.f32 1.0, %v671
        %v673 = vmul.f32 %v670, %v672
        %v674 = vadd.f32 %v670, %v673
        %vm675 = vweird.f32 %v622
        %vm676 = vweird.f32 %v670
        %vm677 = vmor %vm675, %vm676
        %v678 = vsel %vm677, %v670, %v674
        %v679 = vand.u32 2147483647, %v622
        %vm680 = vcmp.eq.f32.partialorder %v679, 8.507059e+37
        %v681 = vand.u32 %v622, 2147483648
        %v682 = vor.u32 1.1754944e-38, %v681
        %v683 = vsel %vm680, %v682, %v678
        %v684 = vmul.f32 %v668, %v683
        %v685 = vrcp.pop %v623
        %v686 = vmul.f32 %v623, %v685
        %v687 = vsub.f32 1.0, %v686
        %v688 = vmul.f32 %v685, %v687
        %v689 = vadd.f32 %v685, %v688
        %vm690 = vweird.f32 %v623
        %vm691 = vweird.f32 %v685
        %vm692 = vmor %vm690, %vm691
        %v693 = vsel %vm692, %v685, %v689
        %v694 = vand.u32 2147483647, %v623
        %vm695 = vcmp.eq.f32.partialorder %v694, 8.507059e+37
        %v696 = vand.u32 %v623, 2147483648
        %v697 = vor.u32 1.1754944e-38, %v696
        %v698 = vsel %vm695, %v697, %v693
        %v699 = vmul.f32 %v669, %v698
        %v700 = vmax.f32 %v554, 0.0
        %v701 = vmax.f32 %v555, 0.0
        %v702 = vmul.f32 %v700, %v700
        %v703 = vmul.f32 %v701, %v701
        %704 = vadd.xlane.f32.xlu0 %v702
        %v705 = vpop.xlane.xlu0 %704
        %706 = vadd.xlane.f32.xlu0 %v703
        %v707 = vpop.xlane.xlu0 %706
        %v708 = vrsqrt.pop %v705
        %v709 = vmul.f32 %v708, %v705
        %v710 = vmul.f32 %v709, %v708
        %v711 = vmul.f32 0.5, %v710
        %v712 = vsub.f32 1.5, %v711
        %v713 = vmul.f32 %v708, %v712
        %v714 = vmul.f32 %v705, %v713
        %vm715 = vcmp.eq.f32.partialorder %v705, inf
        %v716 = vsel %vm715, %v705, %v714
        %vm717 = vcmp.eq.f32.partialorder %v705, 0.0
        %v718 = vand.u32 %v705, 2147483648
        %v719 = vsel %vm717, %v718, %v716
        %v720 = vrsqrt.pop %v707
        %v721 = vmul.f32 %v720, %v707
        %v722 = vmul.f32 %v721, %v720
        %v723 = vmul.f32 0.5, %v722
        %v724 = vsub.f32 1.5, %v723
        %v725 = vmul.f32 %v720, %v724
        %v726 = vmul.f32 %v707, %v725
        %vm727 = vcmp.eq.f32.partialorder %v707, inf
        %v728 = vsel %vm727, %v707, %v726
        %vm729 = vcmp.eq.f32.partialorder %v707, 0.0
        %v730 = vand.u32 %v707, 2147483648
        %v731 = vsel %vm729, %v730, %v728
        %v732 = vmul.f32 %v684, %v620
        %v733 = vmul.f32 %v699, %v621
        %v734 = vmul.f32 %v732, %v719
        %v735 = vmul.f32 %v733, %v731
        %v736 = vmax.f32 %v734, 1e-15
        %v737 = vmax.f32 %v735, 1e-15
        %v738 = vtanh.pop %v736
        %v739 = vtanh.pop %v737
        %v740 = vmax.f32 %v738, 1e-15
        %v741 = vmax.f32 %v739, 1e-15
        %v742 = vrcp.pop %v736
        %v743 = vmul.f32 %v736, %v742
        %v744 = vsub.f32 1.0, %v743
        %v745 = vmul.f32 %v742, %v744
        %v746 = vadd.f32 %v742, %v745
        %vm747 = vweird.f32 %v736
        %vm748 = vweird.f32 %v742
        %vm749 = vmor %vm747, %vm748
        %v750 = vsel %vm749, %v742, %v746
        %v751 = vand.u32 2147483647, %v736
        %vm752 = vcmp.eq.f32.partialorder %v751, 8.507059e+37
        %v753 = vand.u32 %v736, 2147483648
        %v754 = vor.u32 1.1754944e-38, %v753
        %v755 = vsel %vm752, %v754, %v750
        %v756 = vmul.f32 %v738, %v755
        %v757 = vrcp.pop %v737
        %v758 = vmul.f32 %v737, %v757
        %v759 = vsub.f32 1.0, %v758
        %v760 = vmul.f32 %v757, %v759
        %v761 = vadd.f32 %v757, %v760
        %vm762 = vweird.f32 %v737
        %vm763 = vweird.f32 %v757
        %vm764 = vmor %vm762, %vm763
        %v765 = vsel %vm764, %v757, %v761
        %v766 = vand.u32 2147483647, %v737
        %vm767 = vcmp.eq.f32.partialorder %v766, 8.507059e+37
        %v768 = vand.u32 %v737, 2147483648
        %v769 = vor.u32 1.1754944e-38, %v768
        %v770 = vsel %vm767, %v769, %v765
        %v771 = vmul.f32 %v739, %v770
        %v772 = vmul.f32 %v756, %v732
        %v773 = vmul.f32 %v771, %v733
        %vm774 = vcmp.gt.f32.partialorder %v740, 0.996
        %vm775 = vcmp.gt.f32.partialorder %v741, 0.996
        %v776 = vrcp.pop %v740
        %v777 = vmul.f32 %v740, %v776
        %v778 = vsub.f32 1.0, %v777
        %v779 = vmul.f32 %v776, %v778
        %v780 = vadd.f32 %v776, %v779
        %vm781 = vweird.f32 %v740
        %vm782 = vweird.f32 %v776
        %vm783 = vmor %vm781, %vm782
        %v784 = vsel %vm783, %v776, %v780
        %v785 = vand.u32 2147483647, %v740
        %vm786 = vcmp.eq.f32.partialorder %v785, 8.507059e+37
        %v787 = vand.u32 %v740, 2147483648
        %v788 = vor.u32 1.1754944e-38, %v787
        %v789 = vsel %vm786, %v788, %v784
        %v790 = vmul.f32 0.996, %v789
        %v791 = vrcp.pop %v741
        %v792 = vmul.f32 %v741, %v791
        %v793 = vsub.f32 1.0, %v792
        %v794 = vmul.f32 %v791, %v793
        %v795 = vadd.f32 %v791, %v794
        %vm796 = vweird.f32 %v741
        %vm797 = vweird.f32 %v791
        %vm798 = vmor %vm796, %vm797
        %v799 = vsel %vm798, %v791, %v795
        %v800 = vand.u32 2147483647, %v741
        %vm801 = vcmp.eq.f32.partialorder %v800, 8.507059e+37
        %v802 = vand.u32 %v741, 2147483648
        %v803 = vor.u32 1.1754944e-38, %v802
        %v804 = vsel %vm801, %v803, %v799
        %v805 = vmul.f32 0.996, %v804
        %v806 = vsel %vm774, %v790, 1.0
        %v807 = vsel %vm775, %v805, 1.0
        %v808 = vmul.f32 %v772, %v806
        %v809 = vmul.f32 %v773, %v807
        %v810 = vmul.f32 %v700, %v808
        %v811 = vmul.f32 %v701, %v809
        %812 = vst [vmem:[%s236] sm:$0xff] %v810
        %813 = vst [vmem:[%s236 + $0x8] sm:$0xff] %v811
        %s814 = sand.u32 %s121, 1
        %s815 = scalar_lea.sflag [#allocation5], %s814
        %s816 = sand.u32 %s121, 1
        %s817 = smul.addr %s816, 16
        %s818 = scalar_lea.vmem [#allocation8], %s817
        // Predicated region
        $region45: #{tpu_custom_call.1} parent=35 // pred_check
          %p819 = pneg %p131
        $region46: #{tpu_custom_call.1} parent=35 // pred_check_branch
          %821 = sbr.rel (%p819) target = $region48
        $region47: #{tpu_custom_call.1} parent=35 // pred_region
          %s822 = smul.u32 2, %s24
          %824 = vsyncadd %s815, 0
          %s825 = smul.addr %s822, 8
          %s826 = scalar_lea.hbm %s4, %s825
          %s827 = sshll.u32 %s818, 4
          %s828 = int_to_ptr.vmem [resolvable:$true] %s827
          %s829 = sshll.u32 %s826, 4
          %s830 = int_to_ptr.hbm [resolvable:$true] %s829
          %835 = dma.vmem_to_hbm [thread:$0]  %s828, 256, %s830, %s815, 128, 128, 8
        $region48: #{tpu_custom_call.1} parent=35 // pred_fallthru
          _
      $region36: #{tpu_custom_call.1} parent=5 // pred_fallthru
        _
      %p836 = scmp.le.s32.totalorder 2, %s19
      // Predicated region
      $region49: #{tpu_custom_call.1} parent=5 // pred_check
        %p837 = pneg %p836
      $region50: #{tpu_custom_call.1} parent=5 // pred_check_branch
        %839 = sbr.rel (%p837) target = $region52
      $region51: #{tpu_custom_call.1} parent=5 // pred_region
        %s840 = ssub.s32 %s19, 2
        // Predicated region
        $region53: #{tpu_custom_call.1} parent=51 // pred_check
          %p841 = pneg %p137
        $region54: #{tpu_custom_call.1} parent=51 // pred_check_branch
          %843 = sbr.rel (%p841) target = $region56
        $region55: #{tpu_custom_call.1} parent=51 // pred_region
          %s844 = sand.u32 %s122, 1
          %s845 = scalar_lea.sflag [#allocation5], %s844
          %s846 = sand.u32 %s122, 1
          %s847 = smul.addr %s846, 16
          %s848 = scalar_lea.vmem [#allocation8], %s847
          %850 = dma.done %s845, 256
        $region56: #{tpu_custom_call.1} parent=51 // pred_fallthru
          _
      $region52: #{tpu_custom_call.1} parent=5 // pred_fallthru
        _
    $region6: #{tpu_custom_call.1} parent=1 // loop_footer
      %s23 = sadd.s32 1, %s19
    $region7: #{tpu_custom_call.1} parent=1 // loop_footer_branch
      %18 = sbr.rel target = $region3
    $region8: #{tpu_custom_call.1} parent=1 // loop_exit
      _
    %851 = vsyncpa [#allocation4], 1
    %s852 = scalar_lea.sflag [#allocation4], 1
    %853 = vsyncpa %s852, 1
    %854 = vsyncpa [#allocation7], 1
    %855 = vsyncpa [#allocation5], 1
    %s856 = scalar_lea.sflag [#allocation5], 1
    %857 = vsyncpa %s856, 1

// kernel: tpu_custom_call.1
$region0: #{tpu_custom_call.1}
  #allocation0 [shape = 'u32[]', space=smem, size = 0x4, offset = 0x4, fixed_abs, tag = 'smem constant byte address 0x4 - core index']
  #allocation1 [shape = 'u32[72,128]{1,0:T(1,128)}', space=vmem, size = 0x9000, scoped, tag = 'internal scratch']
  #allocation2 [shape = 'f32[1,1]{1,0:T(1,128)S(1)}', space=vmem, size = 0x200, scoped, tag = 'scoped memory for tpu_custom_call.1']
  %s0 = inlined_call_operand.hbm [shape: f32[32,128], index: 0, kind: input, shape index: {}]
  %s1 = inlined_call_operand.hbm [shape: f32[128,128], index: 1, kind: input, shape index: {}]
  %s2 = inlined_call_operand.vmem [shape: f32[1,128], index: 2, kind: input, shape index: {}]
  %s3 = inlined_call_operand.<no memory space> [shape: f32[1,1], index: 3, kind: input, shape index: {}]
  %s4 = inlined_call_operand.hbm [shape: f32[32,128], index: 4, kind: output, shape index: {}]
  %s5 = sld [smem:[#allocation0]]
  $region57: #{tpu_custom_call.1} parent=0
    _
  %s7 = ssub.s32 1, %s5
  %s8 = scalar_select 0, %s7, %s5
  %v9 = vstv %s3
  %10 = vst [vmem:[#allocation2] sm:$0x1] %v9
  $region1: #{tpu_custom_call.1} parent=0
    #allocation3 [shape = 'u8[16384]{0}', space=vmem, size = 0x4000, scoped, tag = 'input window, operand 0']
    #allocation4 [shape = 's32[2]{0}', space=sflag, size = 0x8, scoped, tag = 'scoped memory for tpu_custom_call.1']
    #allocation5 [shape = 's32[2]{0}', space=sflag, size = 0x8, scoped, tag = 'scoped memory for tpu_custom_call.1']
    #allocation6 [shape = 'u8[65536]{0}', space=vmem, size = 0x10000, scoped, tag = 'input window, operand 1, single buffered']
    #allocation7 [shape = 's32[1]{0}', space=sflag, size = 0x4, scoped, tag = 'scoped memory for tpu_custom_call.1']
    #allocation8 [shape = 'u8[16384]{0}', space=vmem, size = 0x4000, scoped, tag = 'output window, operand 0']
    %11 = vsyncpa [#allocation4], 0
    %s12 = scalar_lea.sflag [#allocation4], 1
    %13 = vsyncpa %s12, 0
    %14 = vsyncpa [#allocation7], 0
    %15 = vsyncpa [#allocation5], 0
    %s16 = scalar_lea.sflag [#allocation5], 1
    %17 = vsyncpa %s16, 0
    loop: start=0, step=1, limit=4
    $region2: #{tpu_custom_call.1} parent=1 // loop_pre_header
      _
    $region3: #{tpu_custom_call.1} parent=1 // loop_header
      %s19 = sphi 0, %s23
      %p20 = scmp.ge.s32.totalorder %s19, 4
      %s29 = sphi 0, %s31
      %s32 = sphi 0, %s29
      %s33 = sphi 0, %s32
      %s49 = sphi 0, %s33
      %s53 = sphi 0, %s53
      %s55 = sphi 0, %s53
      %s56 = sphi 0, %s55
      %s70 = sphi 0, %s56
      %s74 = sphi 0, %s74
      %s76 = sphi 0, %s74
      %s77 = sphi 0, %s76
      %s91 = sphi 0, %s77
      %s95 = sphi 0, %s95
      %s97 = sphi 0, %s95
      %s98 = sphi 0, %s97
      %s112 = sphi 0, %s98
      %s118 = sphi 0, %s120
      %s121 = sphi 0, %s118
      %s122 = sphi 0, %s121
      %s138 = sphi 0, %s122
    $region4: #{tpu_custom_call.1} parent=1 // loop_header_branch
      %22 = sbr.rel (%p20) target = $region8
    $region5: #{tpu_custom_call.1} parent=1 // loop_body
      %s24 = ssub.s32 %s19, 1
      %s25 = ssub.s32 %s19, 2
      %s26 = sadd.s32 %s19, 1
      %s27 = ssub.s32 %s19, %s26
      %p28 = scmp.eq.s32.totalorder %s27, 0
      %s30 = sadd.s32 %s29, 1
      %s31 = scalar_select %p28, %s29, %s30
      %p34 = pneg %p28
      %p35 = scmp.eq.s32.totalorder %s19, 1
      %p36 = por %p34, %p35
      %p37 = scmp.ne.s32.totalorder %s29, %s32
      %p38 = scmp.eq.s32.totalorder %s19, 0
      %p39 = por %p37, %p38
      %p40 = scmp.ne.s32.totalorder %s29, %s32
      %p41 = scmp.eq.s32.totalorder %s24, 1
      %p42 = por %p40, %p41
      %p43 = scmp.ne.s32.totalorder %s32, %s33
      %p44 = scmp.eq.s32.totalorder %s24, 0
      %p45 = por %p43, %p44
      %p46 = scmp.ne.s32.totalorder %s32, %s33
      %p47 = scmp.eq.s32.totalorder %s25, 1
      %p48 = por %p46, %p47
      %p50 = scmp.ne.s32.totalorder %s33, %s49
      %p51 = scmp.eq.s32.totalorder %s25, 0
      %p52 = por %p50, %p51
      %s54 = sadd.s32 %s53, 1
      %p57 = scmp.eq.s32.totalorder %s19, 1
      %p58 = scmp.ne.s32.totalorder %s53, %s55
      %p59 = scmp.eq.s32.totalorder %s19, 0
      %p60 = por %p58, %p59
      %p61 = scmp.ne.s32.totalorder %s53, %s55
      %p62 = scmp.eq.s32.totalorder %s24, 1
      %p63 = por %p61, %p62
      %p64 = scmp.ne.s32.totalorder %s55, %s56
      %p65 = scmp.eq.s32.totalorder %s24, 0
      %p66 = por %p64, %p65
      %p67 = scmp.ne.s32.totalorder %s55, %s56
      %p68 = scmp.eq.s32.totalorder %s25, 1
      %p69 = por %p67, %p68
      %p71 = scmp.ne.s32.totalorder %s56, %s70
      %p72 = scmp.eq.s32.totalorder %s25, 0
      %p73 = por %p71, %p72
      %s75 = sadd.s32 %s74, 1
      %p78 = scmp.eq.s32.totalorder %s19, 1
      %p79 = scmp.ne.s32.totalorder %s74, %s76
      %p80 = scmp.eq.s32.totalorder %s19, 0
      %p81 = por %p79, %p80
      %p82 = scmp.ne.s32.totalorder %s74, %s76
      %p83 = scmp.eq.s32.totalorder %s24, 1
      %p84 = por %p82, %p83
      %p85 = scmp.ne.s32.totalorder %s76, %s77
      %p86 = scmp.eq.s32.totalorder %s24, 0
      %p87 = por %p85, %p86
      %p88 = scmp.ne.s32.totalorder %s76, %s77
      %p89 = scmp.eq.s32.totalorder %s25, 1
      %p90 = por %p88, %p89
      %p92 = scmp.ne.s32.totalorder %s77, %s91
      %p93 = scmp.eq.s32.totalorder %s25, 0
      %p94 = por %p92, %p93
      %s96 = sadd.s32 %s95, 1
      %p99 = scmp.eq.s32.totalorder %s19, 1
      %p100 = scmp.ne.s32.totalorder %s95, %s97
      %p101 = scmp.eq.s32.totalorder %s19, 0
      %p102 = por %p100, %p101
      %p103 = scmp.ne.s32.totalorder %s95, %s97
      %p104 = scmp.eq.s32.totalorder %s24, 1
      %p105 = por %p103, %p104
      %p106 = scmp.ne.s32.totalorder %s97, %s98
      %p107 = scmp.eq.s32.totalorder %s24, 0
      %p108 = por %p106, %p107
      %p109 = scmp.ne.s32.totalorder %s97, %s98
      %p110 = scmp.eq.s32.totalorder %s25, 1
      %p111 = por %p109, %p110
      %p113 = scmp.ne.s32.totalorder %s98, %s112
      %p114 = scmp.eq.s32.totalorder %s25, 0
      %p115 = por %p113, %p114
      %s116 = ssub.s32 %s19, %s26
      %p117 = scmp.eq.s32.totalorder %s116, 0
      %s119 = sadd.s32 %s118, 1
      %s120 = scalar_select %p117, %s118, %s119
      %p123 = pneg %p117
      %p124 = scmp.eq.s32.totalorder %s19, 1
      %p125 = por %p123, %p124
      %p126 = scmp.ne.s32.totalorder %s118, %s121
      %p127 = scmp.eq.s32.totalorder %s19, 0
      %p128 = por %p126, %p127
      %p129 = scmp.ne.s32.totalorder %s118, %s121
      %p130 = scmp.eq.s32.totalorder %s24, 1
      %p131 = por %p129, %p130
      %p132 = scmp.ne.s32.totalorder %s121, %s122
      %p133 = scmp.eq.s32.totalorder %s24, 0
      %p134 = por %p132, %p133
      %p135 = scmp.ne.s32.totalorder %s121, %s122
      %p136 = scmp.eq.s32.totalorder %s25, 1
      %p137 = por %p135, %p136
      %p139 = scmp.ne.s32.totalorder %s122, %s138
      %p140 = scmp.eq.s32.totalorder %s25, 0
      %p141 = por %p139, %p140
      %p142 = scmp.le.s32.totalorder 1, %s19
      %p143 = scmp.lt.s32.totalorder %s19, 3
      %p144 = pnand %p142, %p143
      %p145 = pneg %p144
      // Predicated region
      $region9: #{tpu_custom_call.1} parent=5 // pred_check
        _
      $region10: #{tpu_custom_call.1} parent=5 // pred_check_branch
        %147 = sbr.rel (%p144) target = $region12
      $region11: #{tpu_custom_call.1} parent=5 // pred_region
        %s148 = ssub.s32 %s19, 1
        // Predicated region
        $region13: #{tpu_custom_call.1} parent=11 // pred_check
          %p149 = pneg %p66
        $region14: #{tpu_custom_call.1} parent=11 // pred_check_branch
          %151 = sbr.rel (%p149) target = $region16
        $region15: #{tpu_custom_call.1} parent=11 // pred_region
          %153 = vsyncadd [#allocation7], 0
          %s154 = sshll.u32 %s1, 4
          %s155 = int_to_ptr.hbm [resolvable:$true] %s154
          %s156 = sshll.u32 [#allocation6], 4
          %s157 = int_to_ptr.vmem [resolvable:$true] %s156
          %162 = dma.hbm_to_vmem [thread:$0]  %s155, 2048, %s157, [#allocation7], 128, 128, 8
        $region16: #{tpu_custom_call.1} parent=11 // pred_fallthru
          _
        // Predicated region
        $region17: #{tpu_custom_call.1} parent=11 // pred_check
          %p163 = pneg %p87
        $region18: #{tpu_custom_call.1} parent=11 // pred_check_branch
          %165 = sbr.rel (%p163) target = $region20
        $region19: #{tpu_custom_call.1} parent=11 // pred_region
          _
        $region20: #{tpu_custom_call.1} parent=11 // pred_fallthru
          _
        // Predicated region
        $region21: #{tpu_custom_call.1} parent=11 // pred_check
          %p166 = pneg %p108
        $region22: #{tpu_custom_call.1} parent=11 // pred_check_branch
          %168 = sbr.rel (%p166) target = $region24
        $region23: #{tpu_custom_call.1} parent=11 // pred_region
          _
        $region24: #{tpu_custom_call.1} parent=11 // pred_fallthru
          _
      $region12: #{tpu_custom_call.1} parent=5 // pred_fallthru
        _
      %p169 = scmp.lt.s32.totalorder %s19, 2
      // Predicated region
      $region25: #{tpu_custom_call.1} parent=5 // pred_check
        %p170 = pneg %p169
      $region26: #{tpu_custom_call.1} parent=5 // pred_check_branch
        %172 = sbr.rel (%p170) target = $region28
      $region27: #{tpu_custom_call.1} parent=5 // pred_region
        // Predicated region
        $region29: #{tpu_custom_call.1} parent=27 // pred_check
          %p173 = pneg %p39
        $region30: #{tpu_custom_call.1} parent=27 // pred_check_branch
          %175 = sbr.rel (%p173) target = $region32
        $region31: #{tpu_custom_call.1} parent=27 // pred_region
          %s176 = sand.u32 %s29, 1
          %s177 = scalar_lea.sflag [#allocation4], %s176
          %s178 = sand.u32 %s29, 1
          %s179 = smul.addr %s178, 16
          %s180 = scalar_lea.vmem [#allocation3], %s179
          %s181 = smul.u32 2, %s19
          %183 = vsyncadd %s177, 0
          %s184 = smul.addr %s181, 8
          %s185 = scalar_lea.hbm %s0, %s184
          %s186 = sshll.u32 %s185, 4
          %s187 = int_to_ptr.hbm [resolvable:$true] %s186
          %s188 = sshll.u32 %s180, 4
          %s189 = int_to_ptr.vmem [resolvable:$true] %s188
          %194 = dma.hbm_to_vmem [thread:$0]  %s187, 256, %s189, %s177, 128, 128, 8
        $region32: #{tpu_custom_call.1} parent=27 // pred_fallthru
          _
      $region28: #{tpu_custom_call.1} parent=5 // pred_fallthru
        _
      %p195 = scmp.le.s32.totalorder 1, %s19
      %p196 = scmp.lt.s32.totalorder %s19, 3
      %p197 = pnand %p195, %p196
      %p198 = pneg %p197
      // Predicated region
      $region33: #{tpu_custom_call.1} parent=5 // pred_check
        _
      $region34: #{tpu_custom_call.1} parent=5 // pred_check_branch
        %200 = sbr.rel (%p197) target = $region36
      $region35: #{tpu_custom_call.1} parent=5 // pred_region
        %s201 = ssub.s32 %s19, 1
        %s202 = sand.u32 %s32, 1
        %s203 = scalar_lea.sflag [#allocation4], %s202
        %s204 = sand.u32 %s32, 1
        %s205 = smul.addr %s204, 16
        %s206 = scalar_lea.vmem [#allocation3], %s205
        // Predicated region
        $region37: #{tpu_custom_call.1} parent=35 // pred_check
          %p207 = pneg %p45
        $region38: #{tpu_custom_call.1} parent=35 // pred_check_branch
          %209 = sbr.rel (%p207) target = $region40
        $region39: #{tpu_custom_call.1} parent=35 // pred_region
          %211 = dma.done %s203, 256
        $region40: #{tpu_custom_call.1} parent=35 // pred_fallthru
          _
        // Predicated region
        $region41: #{tpu_custom_call.1} parent=35 // pred_check
          %p212 = pneg %p66
        $region42: #{tpu_custom_call.1} parent=35 // pred_check_branch
          %214 = sbr.rel (%p212) target = $region44
        $region43: #{tpu_custom_call.1} parent=35 // pred_region
          %216 = dma.done [#allocation7], 2048
        $region44: #{tpu_custom_call.1} parent=35 // pred_fallthru
          _
        %s217 = sand.u32 %s32, 1
        %s218 = scalar_lea.sflag [#allocation4], %s217
        %s219 = sand.u32 %s32, 1
        %s220 = smul.addr %s219, 16
        %s221 = scalar_lea.vmem [#allocation3], %s220
        %p222 = pneg %p45
        %p223 = pneg %p42
        %p224 = pneg %p66
        %p225 = pneg %p63
        %p226 = pneg %p87
        %p227 = pneg %p84
        %p228 = pneg %p108
        %p229 = pneg %p105
        %p230 = pneg %p134
        %p231 = pneg %p131
        %s232 = sand.u32 %s121, 1
        %s233 = scalar_lea.sflag [#allocation5], %s232
        %s234 = sand.u32 %s121, 1
        %s235 = smul.addr %s234, 16
        %s236 = scalar_lea.vmem [#allocation8], %s235
        %s237 = smul.u32 2, %s24
        %s238 = smul.u32 2, %s24
        %v239 = vld [vmem:[%s206] sm:$0xff]
        %v240 = vld [vmem:[%s206 + $0x8] sm:$0xff]
        %v241 = vld [vmem:[#allocation6] sm:$0xff]
        %v242 = vld [vmem:[#allocation6 + $0x8] sm:$0xff]
        %v243 = vld [vmem:[#allocation6 + $0x10] sm:$0xff]
        %v244 = vld [vmem:[#allocation6 + $0x18] sm:$0xff]
        %v245 = vld [vmem:[#allocation6 + $0x20] sm:$0xff]
        %v246 = vld [vmem:[#allocation6 + $0x28] sm:$0xff]
        %v247 = vld [vmem:[#allocation6 + $0x30] sm:$0xff]
        %v248 = vld [vmem:[#allocation6 + $0x38] sm:$0xff]
        %v249 = vld [vmem:[#allocation6 + $0x40] sm:$0xff]
        %v250 = vld [vmem:[#allocation6 + $0x48] sm:$0xff]
        %v251 = vld [vmem:[#allocation6 + $0x50] sm:$0xff]
        %v252 = vld [vmem:[#allocation6 + $0x58] sm:$0xff]
        %v253 = vld [vmem:[#allocation6 + $0x60] sm:$0xff]
        %v254 = vld [vmem:[#allocation6 + $0x68] sm:$0xff]
        %v255 = vld [vmem:[#allocation6 + $0x70] sm:$0xff]
        %v256 = vld [vmem:[#allocation6 + $0x78] sm:$0xff]
        %v257 = vld [vmem:[%s2] sm:$0x1]
        %v258 = vld [vmem:[#allocation2] sm:$0x1]
        %v259 = vmul.f32 %v239, %v239
        %v260 = vmul.f32 %v240, %v240
        %261 = vadd.xlane.f32.xlu0 %v259
        %v262 = vpop.xlane.xlu0 %261
        %263 = vadd.xlane.f32.xlu0 %v260
        %v264 = vpop.xlane.xlu0 %263
        %v265 = vrsqrt.pop %v262
        %v266 = vmul.f32 %v265, %v262
        %v267 = vmul.f32 %v266, %v265
        %v268 = vmul.f32 0.5, %v267
        %v269 = vsub.f32 1.5, %v268
        %v270 = vmul.f32 %v265, %v269
        %v271 = vmul.f32 %v262, %v270
        %vm272 = vcmp.eq.f32.partialorder %v262, inf
        %v273 = vsel %vm272, %v262, %v271
        %vm274 = vcmp.eq.f32.partialorder %v262, 0.0
        %v275 = vand.u32 %v262, 2147483648
        %v276 = vsel %vm274, %v275, %v273
        %v277 = vrsqrt.pop %v264
        %v278 = vmul.f32 %v277, %v264
        %v279 = vmul.f32 %v278, %v277
        %v280 = vmul.f32 0.5, %v279
        %v281 = vsub.f32 1.5, %v280
        %v282 = vmul.f32 %v277, %v281
        %v283 = vmul.f32 %v264, %v282
        %vm284 = vcmp.eq.f32.partialorder %v264, inf
        %v285 = vsel %vm284, %v264, %v283
        %vm286 = vcmp.eq.f32.partialorder %v264, 0.0
        %v287 = vand.u32 %v264, 2147483648
        %v288 = vsel %vm286, %v287, %v285
        %v289 = vmax.f32 %v276, 1e-15
        %v290 = vmax.f32 %v288, 1e-15
        %291 = vmatpush.xpose.msra.mxu0 %v256
        %292 = vmatpush.xpose.msra.mxu0 %v255
        %293 = vmatpush.xpose.msra.mxu0 %v254
        %294 = vmatpush.xpose.msra.mxu0 %v253
        %295 = vmatpush.xpose.msra.mxu0 %v252
        %296 = vmatpush.xpose.msra.mxu0 %v251
        %297 = vmatpush.xpose.msra.mxu0 %v250
        %298 = vmatpush.xpose.msra.mxu0 %v249
        %299 = vmatpush.xpose.msra.mxu0 %v248
        %300 = vmatpush.xpose.msra.mxu0 %v247
        %301 = vmatpush.xpose.msra.mxu0 %v246
        %302 = vmatpush.xpose.msra.mxu0 %v245
        %303 = vmatpush.xpose.msra.mxu0 %v244
        %304 = vmatpush.xpose.msra.mxu0 %v243
        %305 = vmatpush.xpose.msra.mxu0 %v242
        %306 = vmatpush.xpose.msra.mxu0 %v241
        %307 = vmatmul.f32.gmra.mxu0 %v239
        %v308 = vpop.f32.mrf.mxu0
        %v309 = vadd.f32 0.0, %v308
        %310 = vmatmul.f32.gmra.mxu0 %v240
        %v311 = vpop.f32.mrf.mxu0
        %v312 = vadd.f32 0.0, %v311
        %313 = vdwg.mxu0
        %v314 = vmul.f32 %v309, %v309
        %v315 = vmul.f32 %v312, %v312
        %316 = vadd.xlane.f32.xlu0 %v314
        %v317 = vpop.xlane.xlu0 %316
        %318 = vadd.xlane.f32.xlu0 %v315
        %v319 = vpop.xlane.xlu0 %318
        %v320 = vrsqrt.pop %v317
        %v321 = vmul.f32 %v320, %v317
        %v322 = vmul.f32 %v321, %v320
        %v323 = vmul.f32 0.5, %v322
        %v324 = vsub.f32 1.5, %v323
        %v325 = vmul.f32 %v320, %v324
        %v326 = vmul.f32 %v317, %v325
        %vm327 = vcmp.eq.f32.partialorder %v317, inf
        %v328 = vsel %vm327, %v317, %v326
        %vm329 = vcmp.eq.f32.partialorder %v317, 0.0
        %v330 = vand.u32 %v317, 2147483648
        %v331 = vsel %vm329, %v330, %v328
        %v332 = vrsqrt.pop %v319
        %v333 = vmul.f32 %v332, %v319
        %v334 = vmul.f32 %v333, %v332
        %v335 = vmul.f32 0.5, %v334
        %v336 = vsub.f32 1.5, %v335
        %v337 = vmul.f32 %v332, %v336
        %v338 = vmul.f32 %v319, %v337
        %vm339 = vcmp.eq.f32.partialorder %v319, inf
        %v340 = vsel %vm339, %v319, %v338
        %vm341 = vcmp.eq.f32.partialorder %v319, 0.0
        %v342 = vand.u32 %v319, 2147483648
        %v343 = vsel %vm341, %v342, %v340
        %v344 = vmax.f32 %v331, 1e-15
        %v345 = vmax.f32 %v343, 1e-15
        %v346 = vrcp.pop %v289
        %v347 = vmul.f32 %v289, %v346
        %v348 = vsub.f32 1.0, %v347
        %v349 = vmul.f32 %v346, %v348
        %v350 = vadd.f32 %v346, %v349
        %vm351 = vweird.f32 %v289
        %vm352 = vweird.f32 %v346
        %vm353 = vmor %vm351, %vm352
        %v354 = vsel %vm353, %v346, %v350
        %v355 = vand.u32 2147483647, %v289
        %vm356 = vcmp.eq.f32.partialorder %v355, 8.507059e+37
        %v357 = vand.u32 %v289, 2147483648
        %v358 = vor.u32 1.1754944e-38, %v357
        %v359 = vsel %vm356, %v358, %v354
        %v360 = vmul.f32 %v344, %v359
        %v361 = vrcp.pop %v290
        %v362 = vmul.f32 %v290, %v361
        %v363 = vsub.f32 1.0, %v362
        %v364 = vmul.f32 %v361, %v363
        %v365 = vadd.f32 %v361, %v364
        %vm366 = vweird.f32 %v290
        %vm367 = vweird.f32 %v361
        %vm368 = vmor %vm366, %vm367
        %v369 = vsel %vm368, %v361, %v365
        %v370 = vand.u32 2147483647, %v290
        %vm371 = vcmp.eq.f32.partialorder %v370, 8.507059e+37
        %v372 = vand.u32 %v290, 2147483648
        %v373 = vor.u32 1.1754944e-38, %v372
        %v374 = vsel %vm371, %v373, %v369
        %v375 = vmul.f32 %v345, %v374
        %v376 = vmax.f32 %v289, -1.0
        %v377 = vmax.f32 %v290, -1.0
        %v378 = vmin.f32 %v376, 1.0
        %v379 = vmin.f32 %v377, 1.0
        %v380 = vadd.f32 %v378, 1.0
        %v381 = vlog2.pop %v380
        %v382 = vmul.f32 %v381, 0.6931472
        %v383 = vmul.f32 -0.5, %v378
        %v384 = vadd.f32 %v383, 1.0
        %v385 = vmul.f32 %v384, %v378
        %v386 = vand.u32 2147483647, %v378
        %vm387 = vcmp.lt.f32.partialorder %v386, 0.0004427343
        %v388 = vsel %vm387, %v385, %v382
        %v389 = vadd.f32 %v379, 1.0
        %v390 = vlog2.pop %v389
        %v391 = vmul.f32 %v390, 0.6931472
        %v392 = vmul.f32 -0.5, %v379
        %v393 = vadd.f32 %v392, 1.0
        %v394 = vmul.f32 %v393, %v379
        %v395 = vand.u32 2147483647, %v379
        %vm396 = vcmp.lt.f32.partialorder %v395, 0.0004427343
        %v397 = vsel %vm396, %v394, %v391
        %v398 = vsub.f32 0.0, %v378
        %v399 = vsub.f32 0.0, %v379
        %v400 = vadd.f32 %v398, 1.0
        %v401 = vlog2.pop %v400
        %v402 = vmul.f32 %v401, 0.6931472
        %v403 = vmul.f32 -0.5, %v398
        %v404 = vadd.f32 %v403, 1.0
        %v405 = vmul.f32 %v404, %v398
        %v406 = vand.u32 2147483647, %v398
        %vm407 = vcmp.lt.f32.partialorder %v406, 0.0004427343
        %v408 = vsel %vm407, %v405, %v402
        %v409 = vadd.f32 %v399, 1.0
        %v410 = vlog2.pop %v409
        %v411 = vmul.f32 %v410, 0.6931472
        %v412 = vmul.f32 -0.5, %v399
        %v413 = vadd.f32 %v412, 1.0
        %v414 = vmul.f32 %v413, %v399
        %v415 = vand.u32 2147483647, %v399
        %vm416 = vcmp.lt.f32.partialorder %v415, 0.0004427343
        %v417 = vsel %vm416, %v414, %v411
        %v418 = vsub.f32 %v388, %v408
        %v419 = vsub.f32 %v397, %v417
        %v420 = vmul.f32 %v418, 0.5
        %v421 = vmul.f32 %v419, 0.5
        %v422 = vmul.f32 %v360, %v420
        %v423 = vmul.f32 %v375, %v421
        %v424 = vtanh.pop %v422
        %v425 = vtanh.pop %v423
        %vm426 = vcmp.eq.f32.partialorder %v317, 0.0
        %vm427 = vcmp.eq.f32.partialorder %v319, 0.0
        %v428 = vmax.f32 %v424, 1e-15
        %v429 = vmax.f32 %v425, 1e-15
        %v430 = vmin.f32 %v428, 0.996
        %v431 = vmin.f32 %v429, 0.996
        %v432 = vsel %vm426, 0.0, %v430
        %v433 = vsel %vm427, 0.0, %v431
        %v434 = vrcp.pop %v344
        %v435 = vmul.f32 %v344, %v434
        %v436 = vsub.f32 1.0, %v435
        %v437 = vmul.f32 %v434, %v436
        %v438 = vadd.f32 %v434, %v437
        %vm439 = vweird.f32 %v344
        %vm440 = vweird.f32 %v434
        %vm441 = vmor %vm439, %vm440
        %v442 = vsel %vm441, %v434, %v438
        %v443 = vand.u32 2147483647, %v344
        %vm444 = vcmp.eq.f32.partialorder %v443, 8.507059e+37
        %v445 = vand.u32 %v344, 2147483648
        %v446 = vor.u32 1.1754944e-38, %v445
        %v447 = vsel %vm444, %v446, %v442
        %v448 = vmul.f32 %v432, %v447
        %v449 = vrcp.pop %v345
        %v450 = vmul.f32 %v345, %v449
        %v451 = vsub.f32 1.0, %v450
        %v452 = vmul.f32 %v449, %v451
        %v453 = vadd.f32 %v449, %v452
        %vm454 = vweird.f32 %v345
        %vm455 = vweird.f32 %v449
        %vm456 = vmor %vm454, %vm455
        %v457 = vsel %vm456, %v449, %v453
        %v458 = vand.u32 2147483647, %v345
        %vm459 = vcmp.eq.f32.partialorder %v458, 8.507059e+37
        %v460 = vand.u32 %v345, 2147483648
        %v461 = vor.u32 1.1754944e-38, %v460
        %v462 = vsel %vm459, %v461, %v457
        %v463 = vmul.f32 %v433, %v462
        %v464 = vmul.f32 %v432, %v432
        %v465 = vmul.f32 %v433, %v433
        %v467 = vperm.slane %v257, 0
        %v469 = vmul.f32 %v309, %v467
        %v470 = vmul.f32 %v312, %v467
        %471 = vadd.xlane.f32.xlu0 %v469
        %v472 = vpop.xlane.xlu0 %471
        %473 = vadd.xlane.f32.xlu0 %v470
        %v474 = vpop.xlane.xlu0 %473
        %v475 = vmul.f32 %v448, %v472
        %v476 = vmul.f32 %v463, %v474
        %v477 = vmul.f32 %v475, 2.0
        %v478 = vmul.f32 %v476, 2.0
        %v479 = vadd.f32 %v477, 1.0
        %v480 = vadd.f32 %v478, 1.0
        %v482 = vperm.slane %v258, 0
        %v484 = vmul.f32 %v464, %v482
        %v485 = vmul.f32 %v465, %v482
        %v486 = vadd.f32 %v479, %v484
        %v487 = vadd.f32 %v480, %v485
        %v488 = vmax.f32 %v486, 1e-15
        %v489 = vmax.f32 %v487, 1e-15
        %v490 = vrcp.pop %v488
        %v491 = vmul.f32 %v488, %v490
        %v492 = vsub.f32 1.0, %v491
        %v493 = vmul.f32 %v490, %v492
        %v494 = vadd.f32 %v490, %v493
        %vm495 = vweird.f32 %v488
        %vm496 = vweird.f32 %v490
        %vm497 = vmor %vm495, %vm496
        %v498 = vsel %vm497, %v490, %v494
        %v499 = vand.u32 2147483647, %v488
        %vm500 = vcmp.eq.f32.partialorder %v499, 8.507059e+37
        %v501 = vand.u32 %v488, 2147483648
        %v502 = vor.u32 1.1754944e-38, %v501
        %v503 = vsel %vm500, %v502, %v498
        %v504 = vmul.f32 1.0, %v503
        %v505 = vrcp.pop %v489
        %v506 = vmul.f32 %v489, %v505
        %v507 = vsub.f32 1.0, %v506
        %v508 = vmul.f32 %v505, %v507
        %v509 = vadd.f32 %v505, %v508
        %vm510 = vweird.f32 %v489
        %vm511 = vweird.f32 %v505
        %vm512 = vmor %vm510, %vm511
        %v513 = vsel %vm512, %v505, %v509
        %v514 = vand.u32 2147483647, %v489
        %vm515 = vcmp.eq.f32.partialorder %v514, 8.507059e+37
        %v516 = vand.u32 %v489, 2147483648
        %v517 = vor.u32 1.1754944e-38, %v516
        %v518 = vsel %vm515, %v517, %v513
        %v519 = vmul.f32 1.0, %v518
        %v520 = vadd.f32 %v479, %v482
        %v521 = vadd.f32 %v480, %v482
        %v522 = vmul.f32 %v520, %v448
        %v523 = vmul.f32 %v521, %v463
        %v524 = vmul.f32 %v522, %v504
        %v525 = vmul.f32 %v523, %v519
        %v526 = vsub.f32 1.0, %v464
        %v527 = vsub.f32 1.0, %v465
        %v528 = vmul.f32 %v526, %v504
        %v529 = vmul.f32 %v527, %v519
        %531 = vset.pattern.permute.xlu0 0
        %532 = vperm.xlu0 %531, %v524
        %v533 = vpop.permute.xlu0 %532
        %536 = vset.pattern.permute.xlu0 0
        %537 = vperm.xlu0 %536, %v525
        %v538 = vpop.permute.xlu0 %537
        %v540 = vmul.f32 %v533, %v309
        %v541 = vmul.f32 %v538, %v312
        %543 = vset.pattern.permute.xlu0 0
        %544 = vperm.xlu0 %543, %v528
        %v545 = vpop.permute.xlu0 %544
        %548 = vset.pattern.permute.xlu0 0
        %549 = vperm.xlu0 %548, %v529
        %v550 = vpop.permute.xlu0 %549
        %v552 = vmul.f32 %v545, %v467
        %v553 = vmul.f32 %v550, %v467
        %v554 = vadd.f32 %v540, %v552
        %v555 = vadd.f32 %v541, %v553
        %v556 = vmul.f32 %v554, %v554
        %v557 = vmul.f32 %v555, %v555
        %558 = vadd.xlane.f32.xlu0 %v556
        %v559 = vpop.xlane.xlu0 %558
        %560 = vadd.xlane.f32.xlu0 %v557
        %v561 = vpop.xlane.xlu0 %560
        %v562 = vrsqrt.pop %v559
        %v563 = vmul.f32 %v562, %v559
        %v564 = vmul.f32 %v563, %v562
        %v565 = vmul.f32 0.5, %v564
        %v566 = vsub.f32 1.5, %v565
        %v567 = vmul.f32 %v562, %v566
        %v568 = vmul.f32 %v559, %v567
        %vm569 = vcmp.eq.f32.partialorder %v559, inf
        %v570 = vsel %vm569, %v559, %v568
        %vm571 = vcmp.eq.f32.partialorder %v559, 0.0
        %v572 = vand.u32 %v559, 2147483648
        %v573 = vsel %vm571, %v572, %v570
        %v574 = vrsqrt.pop %v561
        %v575 = vmul.f32 %v574, %v561
        %v576 = vmul.f32 %v575, %v574
        %v577 = vmul.f32 0.5, %v576
        %v578 = vsub.f32 1.5, %v577
        %v579 = vmul.f32 %v574, %v578
        %v580 = vmul.f32 %v561, %v579
        %vm581 = vcmp.eq.f32.partialorder %v561, inf
        %v582 = vsel %vm581, %v561, %v580
        %vm583 = vcmp.eq.f32.partialorder %v561, 0.0
        %v584 = vand.u32 %v561, 2147483648
        %v585 = vsel %vm583, %v584, %v582
        %v586 = vmax.f32 %v573, 1e-15
        %v587 = vmax.f32 %v585, 1e-15
        %vm588 = vcmp.gt.f32.partialorder %v586, 0.996
        %vm589 = vcmp.gt.f32.partialorder %v587, 0.996
        %v590 = vrcp.pop %v586
        %v591 = vmul.f32 %v586, %v590
        %v592 = vsub.f32 1.0, %v591
        %v593 = vmul.f32 %v590, %v592
        %v594 = vadd.f32 %v590, %v593
        %vm595 = vweird.f32 %v586
        %vm596 = vweird.f32 %v590
        %vm597 = vmor %vm595, %vm596
        %v598 = vsel %vm597, %v590, %v594
        %v599 = vand.u32 2147483647, %v586
        %vm600 = vcmp.eq.f32.partialorder %v599, 8.507059e+37
        %v601 = vand.u32 %v586, 2147483648
        %v602 = vor.u32 1.1754944e-38, %v601
        %v603 = vsel %vm600, %v602, %v598
        %v604 = vmul.f32 0.996, %v603
        %v605 = vrcp.pop %v587
        %v606 = vmul.f32 %v587, %v605
        %v607 = vsub.f32 1.0, %v606
        %v608 = vmul.f32 %v605, %v607
        %v609 = vadd.f32 %v605, %v608
        %vm610 = vweird.f32 %v587
        %vm611 = vweird.f32 %v605
        %vm612 = vmor %vm610, %vm611
        %v613 = vsel %vm612, %v605, %v609
        %v614 = vand.u32 2147483647, %v587
        %vm615 = vcmp.eq.f32.partialorder %v614, 8.507059e+37
        %v616 = vand.u32 %v587, 2147483648
        %v617 = vor.u32 1.1754944e-38, %v616
        %v618 = vsel %vm615, %v617, %v613
        %v619 = vmul.f32 0.996, %v618
        %v620 = vsel %vm588, %v604, 1.0
        %v621 = vsel %vm589, %v619, 1.0
        %v622 = vmin.f32 %v586, 0.996
        %v623 = vmin.f32 %v587, 0.996
        %v624 = vmax.f32 %v622, -1.0
        %v625 = vmax.f32 %v623, -1.0
        %v626 = vmin.f32 %v624, 1.0
        %v627 = vmin.f32 %v625, 1.0
        %v628 = vadd.f32 %v626, 1.0
        %v629 = vlog2.pop %v628
        %v630 = vmul.f32 %v629, 0.6931472
        %v631 = vmul.f32 -0.5, %v626
        %v632 = vadd.f32 %v631, 1.0
        %v633 = vmul.f32 %v632, %v626
        %v634 = vand.u32 2147483647, %v626
        %vm635 = vcmp.lt.f32.partialorder %v634, 0.0004427343
        %v636 = vsel %vm635, %v633, %v630
        %v637 = vadd.f32 %v627, 1.0
        %v638 = vlog2.pop %v637
        %v639 = vmul.f32 %v638, 0.6931472
        %v640 = vmul.f32 -0.5, %v627
        %v641 = vadd.f32 %v640, 1.0
        %v642 = vmul.f32 %v641, %v627
        %v643 = vand.u32 2147483647, %v627
        %vm644 = vcmp.lt.f32.partialorder %v643, 0.0004427343
        %v645 = vsel %vm644, %v642, %v639
        %v646 = vsub.f32 0.0, %v626
        %v647 = vsub.f32 0.0, %v627
        %v648 = vadd.f32 %v646, 1.0
        %v649 = vlog2.pop %v648
        %v650 = vmul.f32 %v649, 0.6931472
        %v651 = vmul.f32 -0.5, %v646
        %v652 = vadd.f32 %v651, 1.0
        %v653 = vmul.f32 %v652, %v646
        %v654 = vand.u32 2147483647, %v646
        %vm655 = vcmp.lt.f32.partialorder %v654, 0.0004427343
        %v656 = vsel %vm655, %v653, %v650
        %v657 = vadd.f32 %v647, 1.0
        %v658 = vlog2.pop %v657
        %v659 = vmul.f32 %v658, 0.6931472
        %v660 = vmul.f32 -0.5, %v647
        %v661 = vadd.f32 %v660, 1.0
        %v662 = vmul.f32 %v661, %v647
        %v663 = vand.u32 2147483647, %v647
        %vm664 = vcmp.lt.f32.partialorder %v663, 0.0004427343
        %v665 = vsel %vm664, %v662, %v659
        %v666 = vsub.f32 %v636, %v656
        %v667 = vsub.f32 %v645, %v665
        %v668 = vmul.f32 %v666, 0.5
        %v669 = vmul.f32 %v667, 0.5
        %v670 = vrcp.pop %v622
        %v671 = vmul.f32 %v622, %v670
        %v672 = vsub.f32 1.0, %v671
        %v673 = vmul.f32 %v670, %v672
        %v674 = vadd.f32 %v670, %v673
        %vm675 = vweird.f32 %v622
        %vm676 = vweird.f32 %v670
        %vm677 = vmor %vm675, %vm676
        %v678 = vsel %vm677, %v670, %v674
        %v679 = vand.u32 2147483647, %v622
        %vm680 = vcmp.eq.f32.partialorder %v679, 8.507059e+37
        %v681 = vand.u32 %v622, 2147483648
        %v682 = vor.u32 1.1754944e-38, %v681
        %v683 = vsel %vm680, %v682, %v678
        %v684 = vmul.f32 %v668, %v683
        %v685 = vrcp.pop %v623
        %v686 = vmul.f32 %v623, %v685
        %v687 = vsub.f32 1.0, %v686
        %v688 = vmul.f32 %v685, %v687
        %v689 = vadd.f32 %v685, %v688
        %vm690 = vweird.f32 %v623
        %vm691 = vweird.f32 %v685
        %vm692 = vmor %vm690, %vm691
        %v693 = vsel %vm692, %v685, %v689
        %v694 = vand.u32 2147483647, %v623
        %vm695 = vcmp.eq.f32.partialorder %v694, 8.507059e+37
        %v696 = vand.u32 %v623, 2147483648
        %v697 = vor.u32 1.1754944e-38, %v696
        %v698 = vsel %vm695, %v697, %v693
        %v699 = vmul.f32 %v669, %v698
        %v700 = vmax.f32 %v554, 0.0
        %v701 = vmax.f32 %v555, 0.0
        %v702 = vmul.f32 %v700, %v700
        %v703 = vmul.f32 %v701, %v701
        %704 = vadd.xlane.f32.xlu0 %v702
        %v705 = vpop.xlane.xlu0 %704
        %706 = vadd.xlane.f32.xlu0 %v703
        %v707 = vpop.xlane.xlu0 %706
        %v708 = vrsqrt.pop %v705
        %v709 = vmul.f32 %v708, %v705
        %v710 = vmul.f32 %v709, %v708
        %v711 = vmul.f32 0.5, %v710
        %v712 = vsub.f32 1.5, %v711
        %v713 = vmul.f32 %v708, %v712
        %v714 = vmul.f32 %v705, %v713
        %vm715 = vcmp.eq.f32.partialorder %v705, inf
        %v716 = vsel %vm715, %v705, %v714
        %vm717 = vcmp.eq.f32.partialorder %v705, 0.0
        %v718 = vand.u32 %v705, 2147483648
        %v719 = vsel %vm717, %v718, %v716
        %v720 = vrsqrt.pop %v707
        %v721 = vmul.f32 %v720, %v707
        %v722 = vmul.f32 %v721, %v720
        %v723 = vmul.f32 0.5, %v722
        %v724 = vsub.f32 1.5, %v723
        %v725 = vmul.f32 %v720, %v724
        %v726 = vmul.f32 %v707, %v725
        %vm727 = vcmp.eq.f32.partialorder %v707, inf
        %v728 = vsel %vm727, %v707, %v726
        %vm729 = vcmp.eq.f32.partialorder %v707, 0.0
        %v730 = vand.u32 %v707, 2147483648
        %v731 = vsel %vm729, %v730, %v728
        %v732 = vmul.f32 %v684, %v620
        %v733 = vmul.f32 %v699, %v621
        %v734 = vmul.f32 %v732, %v719
        %v735 = vmul.f32 %v733, %v731
        %v736 = vmax.f32 %v734, 1e-15
        %v737 = vmax.f32 %v735, 1e-15
        %v738 = vtanh.pop %v736
        %v739 = vtanh.pop %v737
        %v740 = vmax.f32 %v738, 1e-15
        %v741 = vmax.f32 %v739, 1e-15
        %v742 = vrcp.pop %v736
        %v743 = vmul.f32 %v736, %v742
        %v744 = vsub.f32 1.0, %v743
        %v745 = vmul.f32 %v742, %v744
        %v746 = vadd.f32 %v742, %v745
        %vm747 = vweird.f32 %v736
        %vm748 = vweird.f32 %v742
        %vm749 = vmor %vm747, %vm748
        %v750 = vsel %vm749, %v742, %v746
        %v751 = vand.u32 2147483647, %v736
        %vm752 = vcmp.eq.f32.partialorder %v751, 8.507059e+37
        %v753 = vand.u32 %v736, 2147483648
        %v754 = vor.u32 1.1754944e-38, %v753
        %v755 = vsel %vm752, %v754, %v750
        %v756 = vmul.f32 %v738, %v755
        %v757 = vrcp.pop %v737
        %v758 = vmul.f32 %v737, %v757
        %v759 = vsub.f32 1.0, %v758
        %v760 = vmul.f32 %v757, %v759
        %v761 = vadd.f32 %v757, %v760
        %vm762 = vweird.f32 %v737
        %vm763 = vweird.f32 %v757
        %vm764 = vmor %vm762, %vm763
        %v765 = vsel %vm764, %v757, %v761
        %v766 = vand.u32 2147483647, %v737
        %vm767 = vcmp.eq.f32.partialorder %v766, 8.507059e+37
        %v768 = vand.u32 %v737, 2147483648
        %v769 = vor.u32 1.1754944e-38, %v768
        %v770 = vsel %vm767, %v769, %v765
        %v771 = vmul.f32 %v739, %v770
        %v772 = vmul.f32 %v756, %v732
        %v773 = vmul.f32 %v771, %v733
        %vm774 = vcmp.gt.f32.partialorder %v740, 0.996
        %vm775 = vcmp.gt.f32.partialorder %v741, 0.996
        %v776 = vrcp.pop %v740
        %v777 = vmul.f32 %v740, %v776
        %v778 = vsub.f32 1.0, %v777
        %v779 = vmul.f32 %v776, %v778
        %v780 = vadd.f32 %v776, %v779
        %vm781 = vweird.f32 %v740
        %vm782 = vweird.f32 %v776
        %vm783 = vmor %vm781, %vm782
        %v784 = vsel %vm783, %v776, %v780
        %v785 = vand.u32 2147483647, %v740
        %vm786 = vcmp.eq.f32.partialorder %v785, 8.507059e+37
        %v787 = vand.u32 %v740, 2147483648
        %v788 = vor.u32 1.1754944e-38, %v787
        %v789 = vsel %vm786, %v788, %v784
        %v790 = vmul.f32 0.996, %v789
        %v791 = vrcp.pop %v741
        %v792 = vmul.f32 %v741, %v791
        %v793 = vsub.f32 1.0, %v792
        %v794 = vmul.f32 %v791, %v793
        %v795 = vadd.f32 %v791, %v794
        %vm796 = vweird.f32 %v741
        %vm797 = vweird.f32 %v791
        %vm798 = vmor %vm796, %vm797
        %v799 = vsel %vm798, %v791, %v795
        %v800 = vand.u32 2147483647, %v741
        %vm801 = vcmp.eq.f32.partialorder %v800, 8.507059e+37
        %v802 = vand.u32 %v741, 2147483648
        %v803 = vor.u32 1.1754944e-38, %v802
        %v804 = vsel %vm801, %v803, %v799
        %v805 = vmul.f32 0.996, %v804
        %v806 = vsel %vm774, %v790, 1.0
        %v807 = vsel %vm775, %v805, 1.0
        %v808 = vmul.f32 %v772, %v806
        %v809 = vmul.f32 %v773, %v807
        %v810 = vmul.f32 %v700, %v808
        %v811 = vmul.f32 %v701, %v809
        %812 = vst [vmem:[%s236] sm:$0xff] %v810
        %813 = vst [vmem:[%s236 + $0x8] sm:$0xff] %v811
        %s814 = sand.u32 %s121, 1
        %s815 = scalar_lea.sflag [#allocation5], %s814
        %s816 = sand.u32 %s121, 1
        %s817 = smul.addr %s816, 16
        %s818 = scalar_lea.vmem [#allocation8], %s817
        // Predicated region
        $region45: #{tpu_custom_call.1} parent=35 // pred_check
          %p819 = pneg %p131
        $region46: #{tpu_custom_call.1} parent=35 // pred_check_branch
          %821 = sbr.rel (%p819) target = $region48
        $region47: #{tpu_custom_call.1} parent=35 // pred_region
          %s822 = smul.u32 2, %s24
          %824 = vsyncadd %s815, 0
          %s825 = smul.addr %s822, 8
          %s826 = scalar_lea.hbm %s4, %s825
          %s827 = sshll.u32 %s818, 4
          %s828 = int_to_ptr.vmem [resolvable:$true] %s827
          %s829 = sshll.u32 %s826, 4
          %s830 = int_to_ptr.hbm [resolvable:$true] %s829
          %835 = dma.vmem_to_hbm [thread:$0]  %s828, 256, %s830, %s815, 128, 128, 8
        $region48: #{tpu_custom_call.1} parent=35 // pred_fallthru
          _
      $region36: #{tpu_custom_call.1} parent=5 // pred_fallthru
        _
      %p836 = scmp.le.s32.totalorder 2, %s19
      // Predicated region
      $region49: #{tpu_custom_call.1} parent=5 // pred_check
        %p837 = pneg %p836
      $region50: #{tpu_custom_call.1} parent=5 // pred_check_branch
        %839 = sbr.rel (%p837) target = $region52
      $region51: #{tpu_custom_call.1} parent=5 // pred_region
        %s840 = ssub.s32 %s19, 2
        // Predicated region
        $region53: #{tpu_custom_call.1} parent=51 // pred_check
          %p841 = pneg %p137
        $region54: #{tpu_custom_call.1} parent=51 // pred_check_branch
          %843 = sbr.rel (%p841) target = $region56
        $region55: #{tpu_custom_call.1} parent=51 // pred_region
          %s844 = sand.u32 %s122, 1
          %s845 = scalar_lea.sflag [#allocation5], %s844
          %s846 = sand.u32 %s122, 1
          %s847 = smul.addr %s846, 16
          %s848 = scalar_lea.vmem [#allocation8], %s847
          %850 = dma.done %s845, 256
        $region56: #{tpu_custom_call.1} parent=51 // pred_fallthru
          _
      $region52: #{tpu_custom_call.1} parent=5 // pred_fallthru
        _
    $region6: #{tpu_custom_call.1} parent=1 // loop_footer
      %s23 = sadd.s32 1, %s19
    $region7: #{tpu_custom_call.1} parent=1 // loop_footer_branch
      %18 = sbr.rel target = $region3
    $region8: #{tpu_custom_call.1} parent=1 // loop_exit
      _
    %851 = vsyncpa [#allocation4], 1
    %s852 = scalar_lea.sflag [#allocation4], 1
    %853 = vsyncpa %s852, 1
    %854 = vsyncpa [#allocation7], 1
    %855 = vsyncpa [#allocation5], 1
    %s856 = scalar_lea.sflag [#allocation5], 1
    %857 = vsyncpa %s856, 1

</llo_original>
